<compile_context>
chip_gen: v5e
topology: v5e:2x2
jax: 0.10.0
libtpu: 0.0.40
codegen_flags: <defaults>
</compile_context>

<pallas_src>
import numpy as np
import jax
import jax.numpy as jnp
from jax import lax
from jax.experimental import pallas as pl
from jax.experimental.pallas import tpu as pltpu

HIDDEN = 128
PROJ_DIM = 64            # hard-coded `64` inside MultiWindowDiscriminator.__init__


# ----------------------------------------------------------------------------------------------
# Kernel
# ----------------------------------------------------------------------------------------------
def make_fused_kernel(win_cfgs, kproj):
    """Fused per-batch-element kernel: for every window, projection -> 3 stride-2 convs ->
    adv Linear.  Layout inside the kernel is (time, channels): time on sublanes, 128 lanes."""
    nw = len(win_cfgs)

    def kernel(*refs):
        in_refs = refs[:3 * nw]
        val_ref = refs[3 * nw]
        h_refs = refs[3 * nw + 1: 3 * nw + 1 + 3 * nw]
        sbuf = refs[3 * nw + 1 + 3 * nw]          # f32 staging scratch, reused by every layer

        # Row 0 of the scratch is a permanent zero row: it acts as the conv's left zero-padding
        # for t == 0, so the x[2t-1] tap needs no roll / mask / concat at all.
        sbuf[pl.ds(0, 1), :] = jnp.zeros((1, HIDDEN), jnp.float32)

        def conv(t_out, wc_ref, w_base, bias, scale=None, shift=None):
            # Conv1d(k=3, stride=2, pad=1): out[t] = x[2t-1]@W0 + x[2t]@W1 + x[2t+1]@W2 + b.
            # The layer input x[0..2*t_out-1] lives in sbuf rows [1, 2*t_out]; row 0 is the pad.
            xm1 = sbuf[pl.ds(0, t_out, stride=2), :].astype(jnp.bfloat16)   # x[2t-1]
            x00 = sbuf[pl.ds(1, t_out, stride=2), :].astype(jnp.bfloat16)   # x[2t]
            xp1 = sbuf[pl.ds(2, t_out, stride=2), :].astype(jnp.bfloat16)   # x[2t+1]
            w0 = wc_ref[pl.ds(w_base, HIDDEN), :]
            w1 = wc_ref[pl.ds(w_base + HIDDEN, HIDDEN), :]
            w2 = wc_ref[pl.ds(w_base + 2 * HIDDEN, HIDDEN), :]
            z = jnp.dot(x00, w1, preferred_element_type=jnp.float32)
            z = z + jnp.dot(xp1, w2, preferred_element_type=jnp.float32)
            z = z + jnp.dot(xm1, w0, preferred_element_type=jnp.float32)
            z = z + bias
            z = jnp.where(z >= 0.0, z, 0.2 * z)     # LeakyReLU(0.2); Dropout2d(0.25)=identity
            if scale is not None:                   # folded BatchNorm1d (eval, eps=0.8)
                z = z * scale + shift
            return z

        v_cols = []
        for wi, (W, T1, T2, T3) in enumerate(win_cfgs):
            xc_ref, wc_ref, vs_ref = in_refs[3 * wi: 3 * wi + 3]
            h1_ref, h2_ref, h3_ref = h_refs[3 * wi: 3 * wi + 3]

            def vrow(i, n=1, _vs=vs_ref):
                return _vs[pl.ds(kproj + i, n), :]

            # Fused in_proj + cond_proj: (W, in+cond) @ (in+cond, 128) in f32 (output lanes
            # 64..127 are zero by construction; conv0's padded weight rows ignore them).
            wproj = vs_ref[pl.ds(0, kproj), :]
            h0 = jnp.dot(xc_ref[...], wproj, preferred_element_type=jnp.float32) + vrow(0)
            sbuf[pl.ds(1, W), :] = h0

            y1 = conv(T1, wc_ref, 0, vrow(1))
            h1_ref[...] = y1
            sbuf[pl.ds(1, T1), :] = y1

            y2 = conv(T2, wc_ref, 3 * HIDDEN, vrow(2), vrow(3), vrow(4))
            h2_ref[...] = y2
            sbuf[pl.ds(1, T2), :] = y2

            y3 = conv(T3, wc_ref, 6 * HIDDEN, vrow(5), vrow(6), vrow(7))
            h3_ref[...] = y3

            # adv_layer: Linear(hidden*T3, 1) applied to x.view(b, c*t) of (B, C, T); adv weight
            # is pre-permuted to (T3, hidden) and the adv bias pre-packed into lane 0 of its own
            # row, so the whole layer is one elementwise mul + two reductions.
            adv_w = vrow(8, T3)                                            # (T3, 128) f32
            row = jnp.sum(y3 * adv_w, axis=0, keepdims=True) + vrow(8 + T3)
            v_cols.append(jnp.sum(row, axis=1, keepdims=True))             # (1, 1)

        val_ref[...] = jnp.concatenate(v_cols, axis=1)                     # (1, n_windows)

    return kernel


# ----------------------------------------------------------------------------------------------
# pallas_call wrapper
# ----------------------------------------------------------------------------------------------
def fused_disc_forward(xc_list, win_cfgs, packed_sel, B, kproj, hs_channels_first=True):
    """Run every window's discriminator for the whole batch in a single pallas_call."""
    nw = len(win_cfgs)
    args, in_specs = [], []
    out_shapes = [jax.ShapeDtypeStruct((B, 1, nw), jnp.float32)]
    out_specs = [pl.BlockSpec((None, 1, nw), lambda b: (b, 0, 0))]
    flops = 0

    for xc, (W, T1, T2, T3), pp in zip(xc_list, win_cfgs, packed_sel):
        cslab, vslab = pp['conv_slab'], pp['vec_slab']
        args += [xc, cslab, vslab]
        in_specs += [
            pl.BlockSpec((None, W, kproj), lambda b: (b, 0, 0)),   # one batch element / step
            pl.BlockSpec(cslab.shape, lambda b: (0, 0)),           # weights stay resident
            pl.BlockSpec(vslab.shape, lambda b: (0, 0)),
        ]
        out_shapes += [jax.ShapeDtypeStruct((B, T1, HIDDEN), jnp.float32),
                       jax.ShapeDtypeStruct((B, T2, HIDDEN), jnp.float32),
                       jax.ShapeDtypeStruct((B, T3, HIDDEN), jnp.float32)]
        out_specs += [pl.BlockSpec((None, T1, HIDDEN), lambda b: (b, 0, 0)),
                      pl.BlockSpec((None, T2, HIDDEN), lambda b: (b, 0, 0)),
                      pl.BlockSpec((None, T3, HIDDEN), lambda b: (b, 0, 0))]
        flops += 2 * (W * kproj * HIDDEN
                      + (T1 + T2 + T3) * 3 * HIDDEN * HIDDEN
                      + T3 * HIDDEN)
    flops *= B

    bytes_accessed = sum(int(np.prod(a.shape)) * np.dtype(a.dtype).itemsize for a in args)
    bytes_accessed += sum(int(np.prod(s.shape)) * np.dtype(s.dtype).itemsize for s in out_shapes)

    w_max = max(c[0] for c in win_cfgs)
    fn = pl.pallas_call(
        make_fused_kernel(win_cfgs, kproj),
        grid=(B,),                                  # batch-parallel: 2x on v7x, no-op on v5e/v6e
        out_shape=tuple(out_shapes),
        in_specs=in_specs,
        out_specs=tuple(out_specs),
        scratch_shapes=[pltpu.VMEM((w_max + 8, HIDDEN), jnp.float32)],
        compiler_params=pltpu.CompilerParams(dimension_semantics=("parallel",)),
        cost_estimate=pl.CostEstimate(flops=int(flops), transcendentals=0,
                                      bytes_accessed=int(bytes_accessed)),
    )
    outs = fn(*args)

    val3d = outs[0]                                 # (B, 1, n_windows)
    hs, idx = [], 1
    for (W, T1, T2, T3) in win_cfgs:
        for _ in (T1, T2, T3):
            hi = outs[idx]                          # (B, T, C)
            if hs_channels_first:                   # PyTorch layout (B, C, T); pass False to
                hi = jnp.transpose(hi, (0, 2, 1))   # skip these tiny launches if consumer allows
            hs.append(hi)
            idx += 1
    return val3d, hs


def multi_window_discriminator_forward(x, x_len, cond, time_lengths, packed_params_list,
                                       start_frames_wins=None, reduction='sum',
                                       hs_channels_first=True):
    """Mirrors MultiWindowDiscriminator.forward. x: (B, T, C), cond: (B, T, H)."""
    B = x.shape[0]
    kproj = x.shape[-1] + cond.shape[-1]
    if start_frames_wins is None:
        start_frames_wins = [None] * len(time_lengths)

    # Single host sync for the clip() bookkeeping (start frames are host-side randomness,
    # exactly like np.random.randint in the PyTorch clip()); everything after is one TPU call.
    t_min = int(np.asarray(x_len).min())
    xcond = jnp.concatenate([x, cond], axis=-1)     # one concat for all windows, sliced below

    xc_list, win_cfgs, packed_sel = [], [], []
    for i, W in enumerate(time_lengths):
        assert W % 8 == 0, "stride-2 conv stack assumes window length divisible by 8"
        t_end = t_min - W
        if t_end < 0:
            continue
        sf = start_frames_wins[i]
        if sf is None:
            sf = [int(np.random.randint(0, t_end + 1))] * B
        start_frames_wins[i] = sf
        s = sf[0]
        # TODO(synk): per-batch-element start frames (sf differing across the batch) are not
        # supported; all elements are clipped at sf[0], like clip_from_same_frame=True.
        xc_list.append(xcond[:, s:s + W, :])        # (B, W, in_dim+cond_dim), f32
        win_cfgs.append((W, W // 2, W // 4, W // 8))
        packed_sel.append(packed_params_list[i])

    if not win_cfgs:
        return None, start_frames_wins, []

    val3d, hs = fused_disc_forward(xc_list, win_cfgs, packed_sel, B, kproj, hs_channels_first)

    if len(win_cfgs) != len(time_lengths):
        return None, start_frames_wins, hs
    if reduction == 'sum':
        validity = jnp.sum(val3d, axis=2)           # (B, 1)
    elif reduction == 'stack':
        validity = val3d                            # (B, 1, n_windows) == torch.stack(..., -1)
    else:
        validity = val3d
    return validity, start_frames_wins, hs


# ----------------------------------------------------------------------------------------------
# One-time parameter packing (hoisted out of the forward path)
# ----------------------------------------------------------------------------------------------
def pack_window_params(p, W):
    """Pack one window's parameters into 2 slabs: bf16 conv weights + f32 everything-else."""
    T3 = W // 8
    pad_c = HIDDEN - PROJ_DIM

    # f32 slab: [Wproj(kproj) | b_proj | c0_b | c1_b | bn1_s | bn1_t | c2_b | bn2_s | bn2_t |
    #            adv_w(T3) | adv_b(lane 0)]  -- all rows are 128 lanes wide.
    wproj = jnp.pad(jnp.concatenate([p['w_in'], p['w_c']], axis=0), ((0, 0), (0, pad_c)))
    bproj = jnp.pad(p['b_in'] + p['b_c'], ((0, 0), (0, pad_c)))
    adv_w2d = jnp.transpose(p['adv_w'].reshape(HIDDEN, T3))           # (T3, 128): [t, c]
    advb_row = jnp.pad(p['adv_b'], ((0, 0), (0, HIDDEN - 1)))         # adv_b in lane 0 only
    vec_slab = jnp.concatenate(
        [wproj, bproj, p['conv0_b'], p['conv1_b'], p['bn1_scale'], p['bn1_shift'],
         p['conv2_b'], p['bn2_scale'], p['bn2_shift'], adv_w2d, advb_row],
        axis=0).astype(jnp.float32)

    # bf16 slab: conv0 (input channels zero-padded 64->128), conv1, conv2; each tap is a
    # contiguous (128, 128) block so the kernel reads it with a static pl.ds.
    w0 = jnp.pad(p['conv0_w'], ((0, 0), (0, pad_c), (0, 0)))          # (3, 128, 128)
    conv_slab = jnp.concatenate(
        [w0.reshape(3 * HIDDEN, HIDDEN),
         p['conv1_w'].reshape(3 * HIDDEN, HIDDEN),
         p['conv2_w'].reshape(3 * HIDDEN, HIDDEN)], axis=0).astype(jnp.bfloat16)

    return {'conv_slab': conv_slab, 'vec_slab': vec_slab}


def init_window_params(key, W, in_dim, cond_dim, hidden):
    """Deterministic synthetic parameters for one window's discriminator (PyTorch layouts)."""
    T3 = W // 8
    keys = jax.random.split(key, 24)

    def nrm(k, shape, scale=0.05):
        return scale * jax.random.normal(k, shape, jnp.float32)

    p = {}
    p['w_in'] = nrm(keys[0], (in_dim, PROJ_DIM))        # nn.Linear(in_dim, 64) (transposed)
    p['b_in'] = nrm(keys[1], (1, PROJ_DIM))
    p['w_c'] = nrm(keys[2], (cond_dim, PROJ_DIM))       # nn.Linear(cond_dim, 64) (transposed)
    p['b_c'] = nrm(keys[3], (1, PROJ_DIM))
    c_ins = [PROJ_DIM, hidden, hidden]
    ki = 4
    for l in range(3):
        w_pt = nrm(keys[ki], (hidden, c_ins[l], 3)); ki += 1     # Conv1d weight (C_out, C_in, K)
        p[f'conv{l}_w'] = jnp.transpose(w_pt, (2, 1, 0))         # kernel layout (K, C_in, C_out)
        p[f'conv{l}_b'] = nrm(keys[ki], (1, hidden)); ki += 1
    eps = 0.8                                                    # nn.BatchNorm1d(hidden, 0.8)
    for l in (1, 2):
        gamma = 1.0 + nrm(keys[ki], (1, hidden), 0.1); ki += 1
        beta = nrm(keys[ki], (1, hidden), 0.1); ki += 1
        rmean = nrm(keys[ki], (1, hidden), 0.1); ki += 1
        rvar = 1.0 + 0.5 * jax.random.uniform(keys[ki], (1, hidden), jnp.float32); ki += 1
        scale = gamma / jnp.sqrt(rvar + eps)
        p[f'bn{l}_scale'] = scale
        p[f'bn{l}_shift'] = beta - rmean * scale
    p['adv_w'] = nrm(keys[ki], (1, hidden * T3)); ki += 1        # nn.Linear(hidden*ds_size, 1)
    p['adv_b'] = nrm(keys[ki], (1, 1)); ki += 1
    return p


# ----------------------------------------------------------------------------------------------
# Pure-JAX f32 reference (matches the PyTorch forward, inference mode)
# ----------------------------------------------------------------------------------------------
def reference_forward(x, cond, time_lengths, params_list, start_frames_wins):
    vals, hs = [], []
    for i, W in enumerate(time_lengths):
        p = params_list[i]
        s = start_frames_wins[i][0]
        xc = x[:, s:s + W, :]
        cc = cond[:, s:s + W, :]
        h = (xc @ p['w_in'] + p['b_in']) + (cc @ p['w_c'] + p['b_c'])    # (B, W, 64)
        z = jnp.transpose(h, (0, 2, 1))                                   # (B, 64, W)  NCT
        for l in range(3):
            w_pt = jnp.transpose(p[f'conv{l}_w'], (2, 1, 0))              # (C_out, C_in, K)
            z = lax.conv_general_dilated(z, w_pt, window_strides=(2,), padding=[(1, 1)],
                                         dimension_numbers=('NCH', 'OIH', 'NCH'))
            z = z + p[f'conv{l}_b'][0][None, :, None]
            z = jnp.where(z >= 0, z, 0.2 * z)
            if l > 0:
                z = z * p[f'bn{l}_scale'][0][None, :, None] + p[f'bn{l}_shift'][0][None, :, None]
            hs.append(z)
        B = z.shape[0]
        flat = z.reshape(B, -1)
        vals.append(flat @ p['adv_w'].T + p['adv_b'])
    return sum(vals), hs


if __name__ == "__main__":
    np.random.seed(0)
    key = jax.random.PRNGKey(0)

    B, T, in_dim, cond_dim = 2, 24, 64, 80
    time_lengths = [8, 16]

    kx, kc, kp = jax.random.split(key, 3)
    x = jax.random.normal(kx, (B, T, in_dim), jnp.float32)          # input "mel" (B, T, C)
    cond = jax.random.normal(kc, (B, T, cond_dim), jnp.float32)     # condition   (B, T, H)
    x_len = jnp.array([T, T - 2], jnp.int32)

    pkeys = jax.random.split(kp, len(time_lengths))
    params_list = [init_window_params(pkeys[i], W, in_dim, cond_dim, HIDDEN)
                   for i, W in enumerate(time_lengths)]
    # Pack/cast parameters ONCE (outside the forward path).
    packed_params = [pack_window_params(params_list[i], W) for i, W in enumerate(time_lengths)]
    packed_params = jax.block_until_ready(packed_params)

    validity, start_frames_wins, h = multi_window_discriminator_forward(
        x, x_len, cond, time_lengths, packed_params)
    validity = jax.block_until_ready(validity)

    # Verify against the pure-JAX f32 reference (bf16 conv weights -> looser tolerance).
    ref_val, ref_h = reference_forward(x, cond, time_lengths, params_list, start_frames_wins)
    np.testing.assert_allclose(np.asarray(validity), np.asarray(ref_val), rtol=5e-2, atol=5e-2)
    assert len(h) == len(ref_h)
    for a, b_ in zip(h, ref_h):
        np.testing.assert_allclose(np.asarray(a), np.asarray(b_), rtol=5e-2, atol=5e-2)

    print("KERNEL_OK")
</pallas_src>

<mosaic_0001>
module attributes {stable_mosaic.version = 11 : i64} {
  func.func @kernel(%arg0: i32, %arg1: memref<1x8x144xf32, #tpu.memory_space<vmem>>, %arg2: memref<1152x128xbf16, #tpu.memory_space<vmem>>, %arg3: memref<154x128xf32, #tpu.memory_space<vmem>>, %arg4: memref<1x16x144xf32, #tpu.memory_space<vmem>>, %arg5: memref<1152x128xbf16, #tpu.memory_space<vmem>>, %arg6: memref<155x128xf32, #tpu.memory_space<vmem>>, %arg7: memref<1x1x2xf32, #tpu.memory_space<vmem>>, %arg8: memref<1x4x128xf32, #tpu.memory_space<vmem>>, %arg9: memref<1x2x128xf32, #tpu.memory_space<vmem>>, %arg10: memref<1x1x128xf32, #tpu.memory_space<vmem>>, %arg11: memref<1x8x128xf32, #tpu.memory_space<vmem>>, %arg12: memref<1x4x128xf32, #tpu.memory_space<vmem>>, %arg13: memref<1x2x128xf32, #tpu.memory_space<vmem>>, %arg14: memref<24x128xf32, #tpu.memory_space<vmem>>) attributes {dimension_semantics = [#tpu.dimension_semantics<parallel>], iteration_bounds = array<i64: 2>, scalar_prefetch = 0 : i64, scratch_operands = 1 : i64, tpu.core_type = #tpu.core_type<tc>, window_params = [{transform_indices = @transform_0, window_bounds = array<i64: 1, 8, 144>}, {pipeline_mode = #tpu.pipeline_mode<synchronous>, transform_indices = @transform_1, window_bounds = array<i64: 1152, 128>}, {pipeline_mode = #tpu.pipeline_mode<synchronous>, transform_indices = @transform_2, window_bounds = array<i64: 154, 128>}, {transform_indices = @transform_3, window_bounds = array<i64: 1, 16, 144>}, {pipeline_mode = #tpu.pipeline_mode<synchronous>, transform_indices = @transform_4, window_bounds = array<i64: 1152, 128>}, {pipeline_mode = #tpu.pipeline_mode<synchronous>, transform_indices = @transform_5, window_bounds = array<i64: 155, 128>}, {transform_indices = @transform_6, window_bounds = array<i64: 1, 1, 2>}, {transform_indices = @transform_7, window_bounds = array<i64: 1, 4, 128>}, {transform_indices = @transform_8, window_bounds = array<i64: 1, 2, 128>}, {transform_indices = @transform_9, window_bounds = array<i64: 1, 1, 128>}, {transform_indices = @transform_10, window_bounds = array<i64: 1, 8, 128>}, {transform_indices = @transform_11, window_bounds = array<i64: 1, 4, 128>}, {transform_indices = @transform_12, window_bounds = array<i64: 1, 2, 128>}]} {
    %cst = arith.constant 0.000000e+00 : f32
    %0 = vector.broadcast %cst : f32 to vector<1x128xf32>
    %c0 = arith.constant 0 : index
    %c0_0 = arith.constant 0 : index
    %1 = vector.load %arg14[%c0, %c0_0] : memref<24x128xf32, #tpu.memory_space<vmem>>, vector<1x128xf32>
    tpu.vector_store %arg14[%c0, %c0_0], %0 {strides = array<i32>} : memref<24x128xf32, #tpu.memory_space<vmem>>, vector<1x128xf32>,
    %c0_1 = arith.constant 0 : index
    %c0_2 = arith.constant 0 : index
    %2 = vector.load %arg3[%c0_1, %c0_2] : memref<154x128xf32, #tpu.memory_space<vmem>>, vector<144x128xf32>
    %c0_3 = arith.constant 0 : index
    %c0_4 = arith.constant 0 : index
    %c0_5 = arith.constant 0 : index
    %3 = vector.load %arg1[%c0_3, %c0_4, %c0_5] : memref<1x8x144xf32, #tpu.memory_space<vmem>>, vector<1x8x144xf32>
    %4 = vector.shape_cast %3 : vector<1x8x144xf32> to vector<8x144xf32>
    %cst_6 = arith.constant dense<0.000000e+00> : vector<8x128xf32>
    %5 = tpu.matmul %4, %2, %cst_6 {dimension_numbers = #tpu.dot_dimension_numbers<[1], [0], [0], [1], [0, 0, 1, 1], [], []>} : vector<8x144xf32>, vector<144x128xf32>, vector<8x128xf32> -> vector<8x128xf32>
    %c144 = arith.constant 144 : index
    %c0_7 = arith.constant 0 : index
    %6 = vector.load %arg3[%c144, %c0_7] : memref<154x128xf32, #tpu.memory_space<vmem>>, vector<1x128xf32>
    %7 = vector.broadcast %6 : vector<1x128xf32> to vector<8x128xf32>
    %8 = arith.addf %5, %7 : vector<8x128xf32>
    %c1 = arith.constant 1 : index
    %c0_8 = arith.constant 0 : index
    %9 = vector.load %arg14[%c1, %c0_8] : memref<24x128xf32, #tpu.memory_space<vmem>>, vector<8x128xf32>
    tpu.vector_store %arg14[%c1, %c0_8], %8 {strides = array<i32>} : memref<24x128xf32, #tpu.memory_space<vmem>>, vector<8x128xf32>,
    %c145 = arith.constant 145 : index
    %c0_9 = arith.constant 0 : index
    %10 = vector.load %arg3[%c145, %c0_9] : memref<154x128xf32, #tpu.memory_space<vmem>>, vector<1x128xf32>
    %c0_10 = arith.constant 0 : index
    %c0_11 = arith.constant 0 : index
    %11 = tpu.strided_load %arg14[%c0_10, %c0_11] {strides = array<i32: 2, 1>} : memref<24x128xf32, #tpu.memory_space<vmem>>, vector<4x128xf32>
    %12 = arith.truncf %11 : vector<4x128xf32> to vector<4x128xbf16>
    %c1_12 = arith.constant 1 : index
    %c0_13 = arith.constant 0 : index
    %13 = tpu.strided_load %arg14[%c1_12, %c0_13] {strides = array<i32: 2, 1>} : memref<24x128xf32, #tpu.memory_space<vmem>>, vector<4x128xf32>
    %14 = arith.truncf %13 : vector<4x128xf32> to vector<4x128xbf16>
    %c2 = arith.constant 2 : index
    %c0_14 = arith.constant 0 : index
    %15 = tpu.strided_load %arg14[%c2, %c0_14] {strides = array<i32: 2, 1>} : memref<24x128xf32, #tpu.memory_space<vmem>>, vector<4x128xf32>
    %16 = arith.truncf %15 : vector<4x128xf32> to vector<4x128xbf16>
    %c0_15 = arith.constant 0 : index
    %c0_16 = arith.constant 0 : index
    %17 = vector.load %arg2[%c0_15, %c0_16] : memref<1152x128xbf16, #tpu.memory_space<vmem>>, vector<128x128xbf16>
    %c128 = arith.constant 128 : index
    %c0_17 = arith.constant 0 : index
    %18 = vector.load %arg2[%c128, %c0_17] : memref<1152x128xbf16, #tpu.memory_space<vmem>>, vector<128x128xbf16>
    %c256 = arith.constant 256 : index
    %c0_18 = arith.constant 0 : index
    %19 = vector.load %arg2[%c256, %c0_18] : memref<1152x128xbf16, #tpu.memory_space<vmem>>, vector<128x128xbf16>
    %cst_19 = arith.constant dense<0.000000e+00> : vector<4x128xf32>
    %20 = tpu.matmul %14, %18, %cst_19 {dimension_numbers = #tpu.dot_dimension_numbers<[1], [0], [0], [1], [0, 0, 1, 1], [], []>} : vector<4x128xbf16>, vector<128x128xbf16>, vector<4x128xf32> -> vector<4x128xf32>
    %cst_20 = arith.constant dense<0.000000e+00> : vector<4x128xf32>
    %21 = tpu.matmul %16, %19, %cst_20 {dimension_numbers = #tpu.dot_dimension_numbers<[1], [0], [0], [1], [0, 0, 1, 1], [], []>} : vector<4x128xbf16>, vector<128x128xbf16>, vector<4x128xf32> -> vector<4x128xf32>
    %22 = arith.addf %20, %21 : vector<4x128xf32>
    %cst_21 = arith.constant dense<0.000000e+00> : vector<4x128xf32>
    %23 = tpu.matmul %12, %17, %cst_21 {dimension_numbers = #tpu.dot_dimension_numbers<[1], [0], [0], [1], [0, 0, 1, 1], [], []>} : vector<4x128xbf16>, vector<128x128xbf16>, vector<4x128xf32> -> vector<4x128xf32>
    %24 = arith.addf %22, %23 : vector<4x128xf32>
    %25 = vector.broadcast %10 : vector<1x128xf32> to vector<4x128xf32>
    %26 = arith.addf %24, %25 : vector<4x128xf32>
    %cst_22 = arith.constant 0.000000e+00 : f32
    %27 = vector.broadcast %cst_22 : f32 to vector<4x128xf32>
    %28 = arith.cmpf oge, %26, %27 : vector<4x128xf32>
    %cst_23 = arith.constant 2.000000e-01 : f32
    %29 = vector.broadcast %cst_23 : f32 to vector<4x128xf32>
    %30 = arith.mulf %29, %26 : vector<4x128xf32>
    %31 = arith.select %28, %26, %30 : vector<4x128xi1>, vector<4x128xf32>
    %c0_24 = arith.constant 0 : index
    %c0_25 = arith.constant 0 : index
    %c0_26 = arith.constant 0 : index
    %32 = vector.load %arg8[%c0_24, %c0_25, %c0_26] : memref<1x4x128xf32, #tpu.memory_space<vmem>>, vector<1x4x128xf32>
    %33 = vector.shape_cast %32 : vector<1x4x128xf32> to vector<4x128xf32>
    %34 = vector.shape_cast %31 : vector<4x128xf32> to vector<1x4x128xf32>
    tpu.vector_store %arg8[%c0_24, %c0_25, %c0_26], %34 {strides = array<i32>} : memref<1x4x128xf32, #tpu.memory_space<vmem>>, vector<1x4x128xf32>,
    %c1_27 = arith.constant 1 : index
    %c0_28 = arith.constant 0 : index
    %35 = vector.load %arg14[%c1_27, %c0_28] : memref<24x128xf32, #tpu.memory_space<vmem>>, vector<4x128xf32>
    tpu.vector_store %arg14[%c1_27, %c0_28], %31 {strides = array<i32>} : memref<24x128xf32, #tpu.memory_space<vmem>>, vector<4x128xf32>,
    %c146 = arith.constant 146 : index
    %c0_29 = arith.constant 0 : index
    %36 = vector.load %arg3[%c146, %c0_29] : memref<154x128xf32, #tpu.memory_space<vmem>>, vector<1x128xf32>
    %c147 = arith.constant 147 : index
    %c0_30 = arith.constant 0 : index
    %37 = vector.load %arg3[%c147, %c0_30] : memref<154x128xf32, #tpu.memory_space<vmem>>, vector<1x128xf32>
    %c148 = arith.constant 148 : index
    %c0_31 = arith.constant 0 : index
    %38 = vector.load %arg3[%c148, %c0_31] : memref<154x128xf32, #tpu.memory_space<vmem>>, vector<1x128xf32>
    %c0_32 = arith.constant 0 : index
    %c0_33 = arith.constant 0 : index
    %39 = tpu.strided_load %arg14[%c0_32, %c0_33] {strides = array<i32: 2, 1>} : memref<24x128xf32, #tpu.memory_space<vmem>>, vector<2x128xf32>
    %40 = arith.truncf %39 : vector<2x128xf32> to vector<2x128xbf16>
    %c1_34 = arith.constant 1 : index
    %c0_35 = arith.constant 0 : index
    %41 = tpu.strided_load %arg14[%c1_34, %c0_35] {strides = array<i32: 2, 1>} : memref<24x128xf32, #tpu.memory_space<vmem>>, vector<2x128xf32>
    %42 = arith.truncf %41 : vector<2x128xf32> to vector<2x128xbf16>
    %c2_36 = arith.constant 2 : index
    %c0_37 = arith.constant 0 : index
    %43 = tpu.strided_load %arg14[%c2_36, %c0_37] {strides = array<i32: 2, 1>} : memref<24x128xf32, #tpu.memory_space<vmem>>, vector<2x128xf32>
    %44 = arith.truncf %43 : vector<2x128xf32> to vector<2x128xbf16>
    %c384 = arith.constant 384 : index
    %c0_38 = arith.constant 0 : index
    %45 = vector.load %arg2[%c384, %c0_38] : memref<1152x128xbf16, #tpu.memory_space<vmem>>, vector<128x128xbf16>
    %c512 = arith.constant 512 : index
    %c0_39 = arith.constant 0 : index
    %46 = vector.load %arg2[%c512, %c0_39] : memref<1152x128xbf16, #tpu.memory_space<vmem>>, vector<128x128xbf16>
    %c640 = arith.constant 640 : index
    %c0_40 = arith.constant 0 : index
    %47 = vector.load %arg2[%c640, %c0_40] : memref<1152x128xbf16, #tpu.memory_space<vmem>>, vector<128x128xbf16>
    %cst_41 = arith.constant dense<0.000000e+00> : vector<2x128xf32>
    %48 = tpu.matmul %42, %46, %cst_41 {dimension_numbers = #tpu.dot_dimension_numbers<[1], [0], [0], [1], [0, 0, 1, 1], [], []>} : vector<2x128xbf16>, vector<128x128xbf16>, vector<2x128xf32> -> vector<2x128xf32>
    %cst_42 = arith.constant dense<0.000000e+00> : vector<2x128xf32>
    %49 = tpu.matmul %44, %47, %cst_42 {dimension_numbers = #tpu.dot_dimension_numbers<[1], [0], [0], [1], [0, 0, 1, 1], [], []>} : vector<2x128xbf16>, vector<128x128xbf16>, vector<2x128xf32> -> vector<2x128xf32>
    %50 = arith.addf %48, %49 : vector<2x128xf32>
    %cst_43 = arith.constant dense<0.000000e+00> : vector<2x128xf32>
    %51 = tpu.matmul %40, %45, %cst_43 {dimension_numbers = #tpu.dot_dimension_numbers<[1], [0], [0], [1], [0, 0, 1, 1], [], []>} : vector<2x128xbf16>, vector<128x128xbf16>, vector<2x128xf32> -> vector<2x128xf32>
    %52 = arith.addf %50, %51 : vector<2x128xf32>
    %53 = vector.broadcast %36 : vector<1x128xf32> to vector<2x128xf32>
    %54 = arith.addf %52, %53 : vector<2x128xf32>
    %cst_44 = arith.constant 0.000000e+00 : f32
    %55 = vector.broadcast %cst_44 : f32 to vector<2x128xf32>
    %56 = arith.cmpf oge, %54, %55 : vector<2x128xf32>
    %cst_45 = arith.constant 2.000000e-01 : f32
    %57 = vector.broadcast %cst_45 : f32 to vector<2x128xf32>
    %58 = arith.mulf %57, %54 : vector<2x128xf32>
    %59 = arith.select %56, %54, %58 : vector<2x128xi1>, vector<2x128xf32>
    %60 = vector.broadcast %37 : vector<1x128xf32> to vector<2x128xf32>
    %61 = arith.mulf %59, %60 : vector<2x128xf32>
    %62 = vector.broadcast %38 : vector<1x128xf32> to vector<2x128xf32>
    %63 = arith.addf %61, %62 : vector<2x128xf32>
    %c0_46 = arith.constant 0 : index
    %c0_47 = arith.constant 0 : index
    %c0_48 = arith.constant 0 : index
    %64 = vector.load %arg9[%c0_46, %c0_47, %c0_48] : memref<1x2x128xf32, #tpu.memory_space<vmem>>, vector<1x2x128xf32>
    %65 = vector.shape_cast %64 : vector<1x2x128xf32> to vector<2x128xf32>
    %66 = vector.shape_cast %63 : vector<2x128xf32> to vector<1x2x128xf32>
    tpu.vector_store %arg9[%c0_46, %c0_47, %c0_48], %66 {strides = array<i32>} : memref<1x2x128xf32, #tpu.memory_space<vmem>>, vector<1x2x128xf32>,
    %c1_49 = arith.constant 1 : index
    %c0_50 = arith.constant 0 : index
    %67 = vector.load %arg14[%c1_49, %c0_50] : memref<24x128xf32, #tpu.memory_space<vmem>>, vector<2x128xf32>
    tpu.vector_store %arg14[%c1_49, %c0_50], %63 {strides = array<i32>} : memref<24x128xf32, #tpu.memory_space<vmem>>, vector<2x128xf32>,
    %c149 = arith.constant 149 : index
    %c0_51 = arith.constant 0 : index
    %68 = vector.load %arg3[%c149, %c0_51] : memref<154x128xf32, #tpu.memory_space<vmem>>, vector<1x128xf32>
    %c150 = arith.constant 150 : index
    %c0_52 = arith.constant 0 : index
    %69 = vector.load %arg3[%c150, %c0_52] : memref<154x128xf32, #tpu.memory_space<vmem>>, vector<1x128xf32>
    %c151 = arith.constant 151 : index
    %c0_53 = arith.constant 0 : index
    %70 = vector.load %arg3[%c151, %c0_53] : memref<154x128xf32, #tpu.memory_space<vmem>>, vector<1x128xf32>
    %c0_54 = arith.constant 0 : index
    %c0_55 = arith.constant 0 : index
    %71 = tpu.strided_load %arg14[%c0_54, %c0_55] {strides = array<i32: 2, 1>} : memref<24x128xf32, #tpu.memory_space<vmem>>, vector<1x128xf32>
    %72 = arith.truncf %71 : vector<1x128xf32> to vector<1x128xbf16>
    %c1_56 = arith.constant 1 : index
    %c0_57 = arith.constant 0 : index
    %73 = tpu.strided_load %arg14[%c1_56, %c0_57] {strides = array<i32: 2, 1>} : memref<24x128xf32, #tpu.memory_space<vmem>>, vector<1x128xf32>
    %74 = arith.truncf %73 : vector<1x128xf32> to vector<1x128xbf16>
    %c2_58 = arith.constant 2 : index
    %c0_59 = arith.constant 0 : index
    %75 = tpu.strided_load %arg14[%c2_58, %c0_59] {strides = array<i32: 2, 1>} : memref<24x128xf32, #tpu.memory_space<vmem>>, vector<1x128xf32>
    %76 = arith.truncf %75 : vector<1x128xf32> to vector<1x128xbf16>
    %c768 = arith.constant 768 : index
    %c0_60 = arith.constant 0 : index
    %77 = vector.load %arg2[%c768, %c0_60] : memref<1152x128xbf16, #tpu.memory_space<vmem>>, vector<128x128xbf16>
    %c896 = arith.constant 896 : index
    %c0_61 = arith.constant 0 : index
    %78 = vector.load %arg2[%c896, %c0_61] : memref<1152x128xbf16, #tpu.memory_space<vmem>>, vector<128x128xbf16>
    %c1024 = arith.constant 1024 : index
    %c0_62 = arith.constant 0 : index
    %79 = vector.load %arg2[%c1024, %c0_62] : memref<1152x128xbf16, #tpu.memory_space<vmem>>, vector<128x128xbf16>
    %cst_63 = arith.constant dense<0.000000e+00> : vector<1x128xf32>
    %80 = tpu.matmul %74, %78, %cst_63 {dimension_numbers = #tpu.dot_dimension_numbers<[1], [0], [0], [1], [0, 0, 1, 1], [], []>} : vector<1x128xbf16>, vector<128x128xbf16>, vector<1x128xf32> -> vector<1x128xf32>
    %cst_64 = arith.constant dense<0.000000e+00> : vector<1x128xf32>
    %81 = tpu.matmul %76, %79, %cst_64 {dimension_numbers = #tpu.dot_dimension_numbers<[1], [0], [0], [1], [0, 0, 1, 1], [], []>} : vector<1x128xbf16>, vector<128x128xbf16>, vector<1x128xf32> -> vector<1x128xf32>
    %82 = arith.addf %80, %81 : vector<1x128xf32>
    %cst_65 = arith.constant dense<0.000000e+00> : vector<1x128xf32>
    %83 = tpu.matmul %72, %77, %cst_65 {dimension_numbers = #tpu.dot_dimension_numbers<[1], [0], [0], [1], [0, 0, 1, 1], [], []>} : vector<1x128xbf16>, vector<128x128xbf16>, vector<1x128xf32> -> vector<1x128xf32>
    %84 = arith.addf %82, %83 : vector<1x128xf32>
    %85 = arith.addf %84, %68 : vector<1x128xf32>
    %cst_66 = arith.constant 0.000000e+00 : f32
    %86 = vector.broadcast %cst_66 : f32 to vector<1x128xf32>
    %87 = arith.cmpf oge, %85, %86 : vector<1x128xf32>
    %cst_67 = arith.constant 2.000000e-01 : f32
    %88 = vector.broadcast %cst_67 : f32 to vector<1x128xf32>
    %89 = arith.mulf %88, %85 : vector<1x128xf32>
    %90 = arith.select %87, %85, %89 : vector<1x128xi1>, vector<1x128xf32>
    %91 = arith.mulf %90, %69 : vector<1x128xf32>
    %92 = arith.addf %91, %70 : vector<1x128xf32>
    %c0_68 = arith.constant 0 : index
    %c0_69 = arith.constant 0 : index
    %c0_70 = arith.constant 0 : index
    %93 = vector.load %arg10[%c0_68, %c0_69, %c0_70] : memref<1x1x128xf32, #tpu.memory_space<vmem>>, vector<1x1x128xf32>
    %94 = vector.shape_cast %93 : vector<1x1x128xf32> to vector<1x128xf32>
    %95 = vector.shape_cast %92 : vector<1x128xf32> to vector<1x1x128xf32>
    tpu.vector_store %arg10[%c0_68, %c0_69, %c0_70], %95 {strides = array<i32>} : memref<1x1x128xf32, #tpu.memory_space<vmem>>, vector<1x1x128xf32>,
    %c152 = arith.constant 152 : index
    %c0_71 = arith.constant 0 : index
    %96 = vector.load %arg3[%c152, %c0_71] : memref<154x128xf32, #tpu.memory_space<vmem>>, vector<1x128xf32>
    %97 = arith.mulf %92, %96 : vector<1x128xf32>
    %cst_72 = arith.constant dense<0.000000e+00> : vector<128xf32>
    %98 = vector.multi_reduction <add>, %97, %cst_72 [0] : vector<1x128xf32> to vector<128xf32>
    %99 = vector.shape_cast %98 : vector<128xf32> to vector<1x128xf32>
    %c153 = arith.constant 153 : index
    %c0_73 = arith.constant 0 : index
    %100 = vector.load %arg3[%c153, %c0_73] : memref<154x128xf32, #tpu.memory_space<vmem>>, vector<1x128xf32>
    %101 = arith.addf %99, %100 : vector<1x128xf32>
    %cst_74 = arith.constant dense<0.000000e+00> : vector<1xf32>
    %102 = vector.multi_reduction <add>, %101, %cst_74 [1] : vector<1x128xf32> to vector<1xf32>
    %103 = vector.shape_cast %102 : vector<1xf32> to vector<1x1xf32>
    %c0_75 = arith.constant 0 : index
    %c0_76 = arith.constant 0 : index
    %104 = vector.load %arg6[%c0_75, %c0_76] : memref<155x128xf32, #tpu.memory_space<vmem>>, vector<144x128xf32>
    %c0_77 = arith.constant 0 : index
    %c0_78 = arith.constant 0 : index
    %c0_79 = arith.constant 0 : index
    %105 = vector.load %arg4[%c0_77, %c0_78, %c0_79] : memref<1x16x144xf32, #tpu.memory_space<vmem>>, vector<1x16x144xf32>
    %106 = vector.shape_cast %105 : vector<1x16x144xf32> to vector<16x144xf32>
    %cst_80 = arith.constant dense<0.000000e+00> : vector<16x128xf32>
    %107 = tpu.matmul %106, %104, %cst_80 {dimension_numbers = #tpu.dot_dimension_numbers<[1], [0], [0], [1], [0, 0, 1, 1], [], []>} : vector<16x144xf32>, vector<144x128xf32>, vector<16x128xf32> -> vector<16x128xf32>
    %c144_81 = arith.constant 144 : index
    %c0_82 = arith.constant 0 : index
    %108 = vector.load %arg6[%c144_81, %c0_82] : memref<155x128xf32, #tpu.memory_space<vmem>>, vector<1x128xf32>
    %109 = vector.broadcast %108 : vector<1x128xf32> to vector<16x128xf32>
    %110 = arith.addf %107, %109 : vector<16x128xf32>
    %c1_83 = arith.constant 1 : index
    %c0_84 = arith.constant 0 : index
    %111 = vector.load %arg14[%c1_83, %c0_84] : memref<24x128xf32, #tpu.memory_space<vmem>>, vector<16x128xf32>
    tpu.vector_store %arg14[%c1_83, %c0_84], %110 {strides = array<i32>} : memref<24x128xf32, #tpu.memory_space<vmem>>, vector<16x128xf32>,
    %c145_85 = arith.constant 145 : index
    %c0_86 = arith.constant 0 : index
    %112 = vector.load %arg6[%c145_85, %c0_86] : memref<155x128xf32, #tpu.memory_space<vmem>>, vector<1x128xf32>
    %c0_87 = arith.constant 0 : index
    %c0_88 = arith.constant 0 : index
    %113 = tpu.strided_load %arg14[%c0_87, %c0_88] {strides = array<i32: 2, 1>} : memref<24x128xf32, #tpu.memory_space<vmem>>, vector<8x128xf32>
    %114 = arith.truncf %113 : vector<8x128xf32> to vector<8x128xbf16>
    %c1_89 = arith.constant 1 : index
    %c0_90 = arith.constant 0 : index
    %115 = tpu.strided_load %arg14[%c1_89, %c0_90] {strides = array<i32: 2, 1>} : memref<24x128xf32, #tpu.memory_space<vmem>>, vector<8x128xf32>
    %116 = arith.truncf %115 : vector<8x128xf32> to vector<8x128xbf16>
    %c2_91 = arith.constant 2 : index
    %c0_92 = arith.constant 0 : index
    %117 = tpu.strided_load %arg14[%c2_91, %c0_92] {strides = array<i32: 2, 1>} : memref<24x128xf32, #tpu.memory_space<vmem>>, vector<8x128xf32>
    %118 = arith.truncf %117 : vector<8x128xf32> to vector<8x128xbf16>
    %c0_93 = arith.constant 0 : index
    %c0_94 = arith.constant 0 : index
    %119 = vector.load %arg5[%c0_93, %c0_94] : memref<1152x128xbf16, #tpu.memory_space<vmem>>, vector<128x128xbf16>
    %c128_95 = arith.constant 128 : index
    %c0_96 = arith.constant 0 : index
    %120 = vector.load %arg5[%c128_95, %c0_96] : memref<1152x128xbf16, #tpu.memory_space<vmem>>, vector<128x128xbf16>
    %c256_97 = arith.constant 256 : index
    %c0_98 = arith.constant 0 : index
    %121 = vector.load %arg5[%c256_97, %c0_98] : memref<1152x128xbf16, #tpu.memory_space<vmem>>, vector<128x128xbf16>
    %cst_99 = arith.constant dense<0.000000e+00> : vector<8x128xf32>
    %122 = tpu.matmul %116, %120, %cst_99 {dimension_numbers = #tpu.dot_dimension_numbers<[1], [0], [0], [1], [0, 0, 1, 1], [], []>} : vector<8x128xbf16>, vector<128x128xbf16>, vector<8x128xf32> -> vector<8x128xf32>
    %cst_100 = arith.constant dense<0.000000e+00> : vector<8x128xf32>
    %123 = tpu.matmul %118, %121, %cst_100 {dimension_numbers = #tpu.dot_dimension_numbers<[1], [0], [0], [1], [0, 0, 1, 1], [], []>} : vector<8x128xbf16>, vector<128x128xbf16>, vector<8x128xf32> -> vector<8x128xf32>
    %124 = arith.addf %122, %123 : vector<8x128xf32>
    %cst_101 = arith.constant dense<0.000000e+00> : vector<8x128xf32>
    %125 = tpu.matmul %114, %119, %cst_101 {dimension_numbers = #tpu.dot_dimension_numbers<[1], [0], [0], [1], [0, 0, 1, 1], [], []>} : vector<8x128xbf16>, vector<128x128xbf16>, vector<8x128xf32> -> vector<8x128xf32>
    %126 = arith.addf %124, %125 : vector<8x128xf32>
    %127 = vector.broadcast %112 : vector<1x128xf32> to vector<8x128xf32>
    %128 = arith.addf %126, %127 : vector<8x128xf32>
    %cst_102 = arith.constant 0.000000e+00 : f32
    %129 = vector.broadcast %cst_102 : f32 to vector<8x128xf32>
    %130 = arith.cmpf oge, %128, %129 : vector<8x128xf32>
    %cst_103 = arith.constant 2.000000e-01 : f32
    %131 = vector.broadcast %cst_103 : f32 to vector<8x128xf32>
    %132 = arith.mulf %131, %128 : vector<8x128xf32>
    %133 = arith.select %130, %128, %132 : vector<8x128xi1>, vector<8x128xf32>
    %c0_104 = arith.constant 0 : index
    %c0_105 = arith.constant 0 : index
    %c0_106 = arith.constant 0 : index
    %134 = vector.load %arg11[%c0_104, %c0_105, %c0_106] : memref<1x8x128xf32, #tpu.memory_space<vmem>>, vector<1x8x128xf32>
    %135 = vector.shape_cast %134 : vector<1x8x128xf32> to vector<8x128xf32>
    %136 = vector.shape_cast %133 : vector<8x128xf32> to vector<1x8x128xf32>
    tpu.vector_store %arg11[%c0_104, %c0_105, %c0_106], %136 {strides = array<i32>} : memref<1x8x128xf32, #tpu.memory_space<vmem>>, vector<1x8x128xf32>,
    %c1_107 = arith.constant 1 : index
    %c0_108 = arith.constant 0 : index
    %137 = vector.load %arg14[%c1_107, %c0_108] : memref<24x128xf32, #tpu.memory_space<vmem>>, vector<8x128xf32>
    tpu.vector_store %arg14[%c1_107, %c0_108], %133 {strides = array<i32>} : memref<24x128xf32, #tpu.memory_space<vmem>>, vector<8x128xf32>,
    %c146_109 = arith.constant 146 : index
    %c0_110 = arith.constant 0 : index
    %138 = vector.load %arg6[%c146_109, %c0_110] : memref<155x128xf32, #tpu.memory_space<vmem>>, vector<1x128xf32>
    %c147_111 = arith.constant 147 : index
    %c0_112 = arith.constant 0 : index
    %139 = vector.load %arg6[%c147_111, %c0_112] : memref<155x128xf32, #tpu.memory_space<vmem>>, vector<1x128xf32>
    %c148_113 = arith.constant 148 : index
    %c0_114 = arith.constant 0 : index
    %140 = vector.load %arg6[%c148_113, %c0_114] : memref<155x128xf32, #tpu.memory_space<vmem>>, vector<1x128xf32>
    %c0_115 = arith.constant 0 : index
    %c0_116 = arith.constant 0 : index
    %141 = tpu.strided_load %arg14[%c0_115, %c0_116] {strides = array<i32: 2, 1>} : memref<24x128xf32, #tpu.memory_space<vmem>>, vector<4x128xf32>
    %142 = arith.truncf %141 : vector<4x128xf32> to vector<4x128xbf16>
    %c1_117 = arith.constant 1 : index
    %c0_118 = arith.constant 0 : index
    %143 = tpu.strided_load %arg14[%c1_117, %c0_118] {strides = array<i32: 2, 1>} : memref<24x128xf32, #tpu.memory_space<vmem>>, vector<4x128xf32>
    %144 = arith.truncf %143 : vector<4x128xf32> to vector<4x128xbf16>
    %c2_119 = arith.constant 2 : index
    %c0_120 = arith.constant 0 : index
    %145 = tpu.strided_load %arg14[%c2_119, %c0_120] {strides = array<i32: 2, 1>} : memref<24x128xf32, #tpu.memory_space<vmem>>, vector<4x128xf32>
    %146 = arith.truncf %145 : vector<4x128xf32> to vector<4x128xbf16>
    %c384_121 = arith.constant 384 : index
    %c0_122 = arith.constant 0 : index
    %147 = vector.load %arg5[%c384_121, %c0_122] : memref<1152x128xbf16, #tpu.memory_space<vmem>>, vector<128x128xbf16>
    %c512_123 = arith.constant 512 : index
    %c0_124 = arith.constant 0 : index
    %148 = vector.load %arg5[%c512_123, %c0_124] : memref<1152x128xbf16, #tpu.memory_space<vmem>>, vector<128x128xbf16>
    %c640_125 = arith.constant 640 : index
    %c0_126 = arith.constant 0 : index
    %149 = vector.load %arg5[%c640_125, %c0_126] : memref<1152x128xbf16, #tpu.memory_space<vmem>>, vector<128x128xbf16>
    %cst_127 = arith.constant dense<0.000000e+00> : vector<4x128xf32>
    %150 = tpu.matmul %144, %148, %cst_127 {dimension_numbers = #tpu.dot_dimension_numbers<[1], [0], [0], [1], [0, 0, 1, 1], [], []>} : vector<4x128xbf16>, vector<128x128xbf16>, vector<4x128xf32> -> vector<4x128xf32>
    %cst_128 = arith.constant dense<0.000000e+00> : vector<4x128xf32>
    %151 = tpu.matmul %146, %149, %cst_128 {dimension_numbers = #tpu.dot_dimension_numbers<[1], [0], [0], [1], [0, 0, 1, 1], [], []>} : vector<4x128xbf16>, vector<128x128xbf16>, vector<4x128xf32> -> vector<4x128xf32>
    %152 = arith.addf %150, %151 : vector<4x128xf32>
    %cst_129 = arith.constant dense<0.000000e+00> : vector<4x128xf32>
    %153 = tpu.matmul %142, %147, %cst_129 {dimension_numbers = #tpu.dot_dimension_numbers<[1], [0], [0], [1], [0, 0, 1, 1], [], []>} : vector<4x128xbf16>, vector<128x128xbf16>, vector<4x128xf32> -> vector<4x128xf32>
    %154 = arith.addf %152, %153 : vector<4x128xf32>
    %155 = vector.broadcast %138 : vector<1x128xf32> to vector<4x128xf32>
    %156 = arith.addf %154, %155 : vector<4x128xf32>
    %cst_130 = arith.constant 0.000000e+00 : f32
    %157 = vector.broadcast %cst_130 : f32 to vector<4x128xf32>
    %158 = arith.cmpf oge, %156, %157 : vector<4x128xf32>
    %cst_131 = arith.constant 2.000000e-01 : f32
    %159 = vector.broadcast %cst_131 : f32 to vector<4x128xf32>
    %160 = arith.mulf %159, %156 : vector<4x128xf32>
    %161 = arith.select %158, %156, %160 : vector<4x128xi1>, vector<4x128xf32>
    %162 = vector.broadcast %139 : vector<1x128xf32> to vector<4x128xf32>
    %163 = arith.mulf %161, %162 : vector<4x128xf32>
    %164 = vector.broadcast %140 : vector<1x128xf32> to vector<4x128xf32>
    %165 = arith.addf %163, %164 : vector<4x128xf32>
    %c0_132 = arith.constant 0 : index
    %c0_133 = arith.constant 0 : index
    %c0_134 = arith.constant 0 : index
    %166 = vector.load %arg12[%c0_132, %c0_133, %c0_134] : memref<1x4x128xf32, #tpu.memory_space<vmem>>, vector<1x4x128xf32>
    %167 = vector.shape_cast %166 : vector<1x4x128xf32> to vector<4x128xf32>
    %168 = vector.shape_cast %165 : vector<4x128xf32> to vector<1x4x128xf32>
    tpu.vector_store %arg12[%c0_132, %c0_133, %c0_134], %168 {strides = array<i32>} : memref<1x4x128xf32, #tpu.memory_space<vmem>>, vector<1x4x128xf32>,
    %c1_135 = arith.constant 1 : index
    %c0_136 = arith.constant 0 : index
    %169 = vector.load %arg14[%c1_135, %c0_136] : memref<24x128xf32, #tpu.memory_space<vmem>>, vector<4x128xf32>
    tpu.vector_store %arg14[%c1_135, %c0_136], %165 {strides = array<i32>} : memref<24x128xf32, #tpu.memory_space<vmem>>, vector<4x128xf32>,
    %c149_137 = arith.constant 149 : index
    %c0_138 = arith.constant 0 : index
    %170 = vector.load %arg6[%c149_137, %c0_138] : memref<155x128xf32, #tpu.memory_space<vmem>>, vector<1x128xf32>
    %c150_139 = arith.constant 150 : index
    %c0_140 = arith.constant 0 : index
    %171 = vector.load %arg6[%c150_139, %c0_140] : memref<155x128xf32, #tpu.memory_space<vmem>>, vector<1x128xf32>
    %c151_141 = arith.constant 151 : index
    %c0_142 = arith.constant 0 : index
    %172 = vector.load %arg6[%c151_141, %c0_142] : memref<155x128xf32, #tpu.memory_space<vmem>>, vector<1x128xf32>
    %c0_143 = arith.constant 0 : index
    %c0_144 = arith.constant 0 : index
    %173 = tpu.strided_load %arg14[%c0_143, %c0_144] {strides = array<i32: 2, 1>} : memref<24x128xf32, #tpu.memory_space<vmem>>, vector<2x128xf32>
    %174 = arith.truncf %173 : vector<2x128xf32> to vector<2x128xbf16>
    %c1_145 = arith.constant 1 : index
    %c0_146 = arith.constant 0 : index
    %175 = tpu.strided_load %arg14[%c1_145, %c0_146] {strides = array<i32: 2, 1>} : memref<24x128xf32, #tpu.memory_space<vmem>>, vector<2x128xf32>
    %176 = arith.truncf %175 : vector<2x128xf32> to vector<2x128xbf16>
    %c2_147 = arith.constant 2 : index
    %c0_148 = arith.constant 0 : index
    %177 = tpu.strided_load %arg14[%c2_147, %c0_148] {strides = array<i32: 2, 1>} : memref<24x128xf32, #tpu.memory_space<vmem>>, vector<2x128xf32>
    %178 = arith.truncf %177 : vector<2x128xf32> to vector<2x128xbf16>
    %c768_149 = arith.constant 768 : index
    %c0_150 = arith.constant 0 : index
    %179 = vector.load %arg5[%c768_149, %c0_150] : memref<1152x128xbf16, #tpu.memory_space<vmem>>, vector<128x128xbf16>
    %c896_151 = arith.constant 896 : index
    %c0_152 = arith.constant 0 : index
    %180 = vector.load %arg5[%c896_151, %c0_152] : memref<1152x128xbf16, #tpu.memory_space<vmem>>, vector<128x128xbf16>
    %c1024_153 = arith.constant 1024 : index
    %c0_154 = arith.constant 0 : index
    %181 = vector.load %arg5[%c1024_153, %c0_154] : memref<1152x128xbf16, #tpu.memory_space<vmem>>, vector<128x128xbf16>
    %cst_155 = arith.constant dense<0.000000e+00> : vector<2x128xf32>
    %182 = tpu.matmul %176, %180, %cst_155 {dimension_numbers = #tpu.dot_dimension_numbers<[1], [0], [0], [1], [0, 0, 1, 1], [], []>} : vector<2x128xbf16>, vector<128x128xbf16>, vector<2x128xf32> -> vector<2x128xf32>
    %cst_156 = arith.constant dense<0.000000e+00> : vector<2x128xf32>
    %183 = tpu.matmul %178, %181, %cst_156 {dimension_numbers = #tpu.dot_dimension_numbers<[1], [0], [0], [1], [0, 0, 1, 1], [], []>} : vector<2x128xbf16>, vector<128x128xbf16>, vector<2x128xf32> -> vector<2x128xf32>
    %184 = arith.addf %182, %183 : vector<2x128xf32>
    %cst_157 = arith.constant dense<0.000000e+00> : vector<2x128xf32>
    %185 = tpu.matmul %174, %179, %cst_157 {dimension_numbers = #tpu.dot_dimension_numbers<[1], [0], [0], [1], [0, 0, 1, 1], [], []>} : vector<2x128xbf16>, vector<128x128xbf16>, vector<2x128xf32> -> vector<2x128xf32>
    %186 = arith.addf %184, %185 : vector<2x128xf32>
    %187 = vector.broadcast %170 : vector<1x128xf32> to vector<2x128xf32>
    %188 = arith.addf %186, %187 : vector<2x128xf32>
    %cst_158 = arith.constant 0.000000e+00 : f32
    %189 = vector.broadcast %cst_158 : f32 to vector<2x128xf32>
    %190 = arith.cmpf oge, %188, %189 : vector<2x128xf32>
    %cst_159 = arith.constant 2.000000e-01 : f32
    %191 = vector.broadcast %cst_159 : f32 to vector<2x128xf32>
    %192 = arith.mulf %191, %188 : vector<2x128xf32>
    %193 = arith.select %190, %188, %192 : vector<2x128xi1>, vector<2x128xf32>
    %194 = vector.broadcast %171 : vector<1x128xf32> to vector<2x128xf32>
    %195 = arith.mulf %193, %194 : vector<2x128xf32>
    %196 = vector.broadcast %172 : vector<1x128xf32> to vector<2x128xf32>
    %197 = arith.addf %195, %196 : vector<2x128xf32>
    %c0_160 = arith.constant 0 : index
    %c0_161 = arith.constant 0 : index
    %c0_162 = arith.constant 0 : index
    %198 = vector.load %arg13[%c0_160, %c0_161, %c0_162] : memref<1x2x128xf32, #tpu.memory_space<vmem>>, vector<1x2x128xf32>
    %199 = vector.shape_cast %198 : vector<1x2x128xf32> to vector<2x128xf32>
    %200 = vector.shape_cast %197 : vector<2x128xf32> to vector<1x2x128xf32>
    tpu.vector_store %arg13[%c0_160, %c0_161, %c0_162], %200 {strides = array<i32>} : memref<1x2x128xf32, #tpu.memory_space<vmem>>, vector<1x2x128xf32>,
    %c152_163 = arith.constant 152 : index
    %c0_164 = arith.constant 0 : index
    %201 = vector.load %arg6[%c152_163, %c0_164] : memref<155x128xf32, #tpu.memory_space<vmem>>, vector<2x128xf32>
    %202 = arith.mulf %197, %201 : vector<2x128xf32>
    %cst_165 = arith.constant dense<0.000000e+00> : vector<128xf32>
    %203 = vector.multi_reduction <add>, %202, %cst_165 [0] : vector<2x128xf32> to vector<128xf32>
    %204 = vector.shape_cast %203 : vector<128xf32> to vector<1x128xf32>
    %c154 = arith.constant 154 : index
    %c0_166 = arith.constant 0 : index
    %205 = vector.load %arg6[%c154, %c0_166] : memref<155x128xf32, #tpu.memory_space<vmem>>, vector<1x128xf32>
    %206 = arith.addf %204, %205 : vector<1x128xf32>
    %cst_167 = arith.constant dense<0.000000e+00> : vector<1xf32>
    %207 = vector.multi_reduction <add>, %206, %cst_167 [1] : vector<1x128xf32> to vector<1xf32>
    %208 = vector.shape_cast %207 : vector<1xf32> to vector<1x1xf32>
    %209 = tpu.concatenate %103, %208 in 1 : vector<1x1xf32>, vector<1x1xf32> -> vector<1x2xf32>
    %c0_168 = arith.constant 0 : index
    %c0_169 = arith.constant 0 : index
    %c0_170 = arith.constant 0 : index
    %210 = vector.load %arg7[%c0_168, %c0_169, %c0_170] : memref<1x1x2xf32, #tpu.memory_space<vmem>>, vector<1x1x2xf32>
    %211 = vector.shape_cast %210 : vector<1x1x2xf32> to vector<1x2xf32>
    %212 = vector.shape_cast %209 : vector<1x2xf32> to vector<1x1x2xf32>
    tpu.vector_store %arg7[%c0_168, %c0_169, %c0_170], %212 {strides = array<i32>} : memref<1x1x2xf32, #tpu.memory_space<vmem>>, vector<1x1x2xf32>,
    return
  }
  func.func @transform_0(%arg0: i32) -> (i32, i32, i32) {
    %c0_i32 = arith.constant 0 : i32
    %c0_i32_0 = arith.constant 0 : i32
    %c0_i32_1 = arith.constant 0 : i32
    return %arg0, %c0_i32, %c0_i32_0 : i32, i32, i32
  }
  func.func @transform_1(%arg0: i32) -> (i32, i32) {
    %c0_i32 = arith.constant 0 : i32
    %c0_i32_0 = arith.constant 0 : i32
    %c0_i32_1 = arith.constant 0 : i32
    return %c0_i32, %c0_i32_0 : i32, i32
  }
  func.func @transform_2(%arg0: i32) -> (i32, i32) {
    %c0_i32 = arith.constant 0 : i32
    %c0_i32_0 = arith.constant 0 : i32
    %c0_i32_1 = arith.constant 0 : i32
    return %c0_i32, %c0_i32_0 : i32, i32
  }
  func.func @transform_3(%arg0: i32) -> (i32, i32, i32) {
    %c0_i32 = arith.constant 0 : i32
    %c0_i32_0 = arith.constant 0 : i32
    %c0_i32_1 = arith.constant 0 : i32
    return %arg0, %c0_i32, %c0_i32_0 : i32, i32, i32
  }
  func.func @transform_4(%arg0: i32) -> (i32, i32) {
    %c0_i32 = arith.constant 0 : i32
    %c0_i32_0 = arith.constant 0 : i32
    %c0_i32_1 = arith.constant 0 : i32
    return %c0_i32, %c0_i32_0 : i32, i32
  }
  func.func @transform_5(%arg0: i32) -> (i32, i32) {
    %c0_i32 = arith.constant 0 : i32
    %c0_i32_0 = arith.constant 0 : i32
    %c0_i32_1 = arith.constant 0 : i32
    return %c0_i32, %c0_i32_0 : i32, i32
  }
  func.func @transform_6(%arg0: i32) -> (i32, i32, i32) {
    %c0_i32 = arith.constant 0 : i32
    %c0_i32_0 = arith.constant 0 : i32
    %c0_i32_1 = arith.constant 0 : i32
    return %arg0, %c0_i32, %c0_i32_0 : i32, i32, i32
  }
  func.func @transform_7(%arg0: i32) -> (i32, i32, i32) {
    %c0_i32 = arith.constant 0 : i32
    %c0_i32_0 = arith.constant 0 : i32
    %c0_i32_1 = arith.constant 0 : i32
    return %arg0, %c0_i32, %c0_i32_0 : i32, i32, i32
  }
  func.func @transform_8(%arg0: i32) -> (i32, i32, i32) {
    %c0_i32 = arith.constant 0 : i32
    %c0_i32_0 = arith.constant 0 : i32
    %c0_i32_1 = arith.constant 0 : i32
    return %arg0, %c0_i32, %c0_i32_0 : i32, i32, i32
  }
  func.func @transform_9(%arg0: i32) -> (i32, i32, i32) {
    %c0_i32 = arith.constant 0 : i32
    %c0_i32_0 = arith.constant 0 : i32
    %c0_i32_1 = arith.constant 0 : i32
    return %arg0, %c0_i32, %c0_i32_0 : i32, i32, i32
  }
  func.func @transform_10(%arg0: i32) -> (i32, i32, i32) {
    %c0_i32 = arith.constant 0 : i32
    %c0_i32_0 = arith.constant 0 : i32
    %c0_i32_1 = arith.constant 0 : i32
    return %arg0, %c0_i32, %c0_i32_0 : i32, i32, i32
  }
  func.func @transform_11(%arg0: i32) -> (i32, i32, i32) {
    %c0_i32 = arith.constant 0 : i32
    %c0_i32_0 = arith.constant 0 : i32
    %c0_i32_1 = arith.constant 0 : i32
    return %arg0, %c0_i32, %c0_i32_0 : i32, i32, i32
  }
  func.func @transform_12(%arg0: i32) -> (i32, i32, i32) {
    %c0_i32 = arith.constant 0 : i32
    %c0_i32_0 = arith.constant 0 : i32
    %c0_i32_1 = arith.constant 0 : i32
    return %arg0, %c0_i32, %c0_i32_0 : i32, i32, i32
  }
}

</mosaic_0001>

<llo_original>
// kernel: tpu_custom_call.1
$region0: #{tpu_custom_call.1}
  #allocation0 [shape = 'u32[]', space=smem, size = 0x4, offset = 0x4, fixed_abs, tag = 'smem constant byte address 0x4 - core index']
  #allocation1 [shape = 'u32[72,128]{1,0:T(1,128)}', space=vmem, size = 0x9000, scoped, tag = 'internal scratch']
  #allocation2 [shape = 'f32[24,128]{1,0:T(8,128)}', space=vmem, size = 0x3000, scoped, tag = 'scratch operand']
  %s0 = inlined_call_operand.hbm [shape: f32[2,8,144], index: 0, kind: input, shape index: {}]
  %s1 = inlined_call_operand.hbm [shape: bf16[1152,128], index: 1, kind: input, shape index: {}]
  %s2 = inlined_call_operand.hbm [shape: f32[154,128], index: 2, kind: input, shape index: {}]
  %s3 = inlined_call_operand.hbm [shape: f32[2,16,144], index: 3, kind: input, shape index: {}]
  %s4 = inlined_call_operand.hbm [shape: bf16[1152,128], index: 4, kind: input, shape index: {}]
  %s5 = inlined_call_operand.hbm [shape: f32[155,128], index: 5, kind: input, shape index: {}]
  %s6 = inlined_call_operand.hbm [shape: f32[2,1,2], index: 6, kind: output, shape index: {0}]
  %s7 = inlined_call_operand.hbm [shape: f32[2,4,128], index: 7, kind: output, shape index: {1}]
  %s8 = inlined_call_operand.hbm [shape: f32[2,2,128], index: 8, kind: output, shape index: {2}]
  %s9 = inlined_call_operand.hbm [shape: f32[2,1,128], index: 9, kind: output, shape index: {3}]
  %s10 = inlined_call_operand.hbm [shape: f32[2,8,128], index: 10, kind: output, shape index: {4}]
  %s11 = inlined_call_operand.hbm [shape: f32[2,4,128], index: 11, kind: output, shape index: {5}]
  %s12 = inlined_call_operand.hbm [shape: f32[2,2,128], index: 12, kind: output, shape index: {6}]
  %13 = xla_tuple %s6, %s7, %s8, %s9, %s10, %s11, %s12
  %s14 = sld [smem:[#allocation0]]
  $region129: #{tpu_custom_call.1} parent=0
    _
  %s16 = ssub.s32 1, %s14
  %s17 = scalar_select 0, %s16, %s14
  $region1: #{tpu_custom_call.1} parent=0
    #allocation3 [shape = 'u8[16384]{0}', space=vmem, size = 0x4000, scoped, tag = 'input window, operand 0']
    #allocation4 [shape = 's32[2]{0}', space=sflag, size = 0x8, scoped, tag = 'scoped memory for tpu_custom_call.1']
    #allocation5 [shape = 's32[2]{0}', space=sflag, size = 0x8, scoped, tag = 'scoped memory for tpu_custom_call.1']
    #allocation6 [shape = 'u8[294912]{0}', space=vmem, size = 0x48000, scoped, tag = 'input window, operand 1, single buffered']
    #allocation7 [shape = 's32[1]{0}', space=sflag, size = 0x4, scoped, tag = 'scoped memory for tpu_custom_call.1']
    #allocation8 [shape = 'u8[81920]{0}', space=vmem, size = 0x14000, scoped, tag = 'input window, operand 2, single buffered']
    #allocation9 [shape = 'u8[32768]{0}', space=vmem, size = 0x8000, scoped, tag = 'input window, operand 3']
    #allocation10 [shape = 's32[2]{0}', space=sflag, size = 0x8, scoped, tag = 'scoped memory for tpu_custom_call.1']
    #allocation11 [shape = 'u8[294912]{0}', space=vmem, size = 0x48000, scoped, tag = 'input window, operand 4, single buffered']
    #allocation12 [shape = 'u8[81920]{0}', space=vmem, size = 0x14000, scoped, tag = 'input window, operand 5, single buffered']
    #allocation13 [shape = 's32[1]{0}', space=sflag, size = 0x4, scoped, tag = 'scoped memory for tpu_custom_call.1']
    #allocation14 [shape = 'u8[1024]{0}', space=vmem, size = 0x400, scoped, tag = 'output window, operand 0']
    #allocation15 [shape = 'u8[4096]{0}', space=vmem, size = 0x1000, scoped, tag = 'output window, operand 1']
    #allocation16 [shape = 's32[2]{0}', space=sflag, size = 0x8, scoped, tag = 'scoped memory for tpu_custom_call.1']
    #allocation17 [shape = 'u8[2048]{0}', space=vmem, size = 0x800, scoped, tag = 'output window, operand 2']
    #allocation18 [shape = 'u8[1024]{0}', space=vmem, size = 0x400, scoped, tag = 'output window, operand 3']
    #allocation19 [shape = 's32[2]{0}', space=sflag, size = 0x8, scoped, tag = 'scoped memory for tpu_custom_call.1']
    #allocation20 [shape = 'u8[8192]{0}', space=vmem, size = 0x2000, scoped, tag = 'output window, operand 4']
    #allocation21 [shape = 'u8[4096]{0}', space=vmem, size = 0x1000, scoped, tag = 'output window, operand 5']
    #allocation22 [shape = 's32[2]{0}', space=sflag, size = 0x8, scoped, tag = 'scoped memory for tpu_custom_call.1']
    #allocation23 [shape = 'u8[2048]{0}', space=vmem, size = 0x800, scoped, tag = 'output window, operand 6']
    %18 = vsyncpa [#allocation4], 0
    %s19 = scalar_lea.sflag [#allocation4], 1
    %20 = vsyncpa %s19, 0
    %21 = vsyncpa [#allocation7], 0
    %22 = vsyncpa [#allocation10], 0
    %s23 = scalar_lea.sflag [#allocation10], 1
    %24 = vsyncpa %s23, 0
    %25 = vsyncpa [#allocation13], 0
    %26 = vsyncpa [#allocation5], 0
    %s27 = scalar_lea.sflag [#allocation5], 1
    %28 = vsyncpa %s27, 0
    %29 = vsyncpa [#allocation16], 0
    %s30 = scalar_lea.sflag [#allocation16], 1
    %31 = vsyncpa %s30, 0
    %32 = vsyncpa [#allocation19], 0
    %s33 = scalar_lea.sflag [#allocation19], 1
    %34 = vsyncpa %s33, 0
    %35 = vsyncpa [#allocation22], 0
    %s36 = scalar_lea.sflag [#allocation22], 1
    %37 = vsyncpa %s36, 0
    loop: start=0, step=1, limit=4
    $region2: #{tpu_custom_call.1} parent=1 // loop_pre_header
      _
    $region3: #{tpu_custom_call.1} parent=1 // loop_header
      %s39 = sphi 0, %s43
      %p40 = scmp.ge.s32.totalorder %s39, 4
      %s49 = sphi 0, %s51
      %s52 = sphi 0, %s49
      %s53 = sphi 0, %s52
      %s69 = sphi 0, %s53
      %s73 = sphi 0, %s73
      %s75 = sphi 0, %s73
      %s76 = sphi 0, %s75
      %s90 = sphi 0, %s76
      %s94 = sphi 0, %s94
      %s96 = sphi 0, %s94
      %s97 = sphi 0, %s96
      %s111 = sphi 0, %s97
      %s117 = sphi 0, %s119
      %s120 = sphi 0, %s117
      %s121 = sphi 0, %s120
      %s137 = sphi 0, %s121
      %s141 = sphi 0, %s141
      %s143 = sphi 0, %s141
      %s144 = sphi 0, %s143
      %s158 = sphi 0, %s144
      %s162 = sphi 0, %s162
      %s164 = sphi 0, %s162
      %s165 = sphi 0, %s164
      %s179 = sphi 0, %s165
      %s185 = sphi 0, %s187
      %s188 = sphi 0, %s185
      %s189 = sphi 0, %s188
      %s205 = sphi 0, %s189
      %s211 = sphi 0, %s213
      %s214 = sphi 0, %s211
      %s215 = sphi 0, %s214
      %s231 = sphi 0, %s215
      %s237 = sphi 0, %s239
      %s240 = sphi 0, %s237
      %s241 = sphi 0, %s240
      %s257 = sphi 0, %s241
      %s263 = sphi 0, %s265
      %s266 = sphi 0, %s263
      %s267 = sphi 0, %s266
      %s283 = sphi 0, %s267
      %s289 = sphi 0, %s291
      %s292 = sphi 0, %s289
      %s293 = sphi 0, %s292
      %s309 = sphi 0, %s293
      %s315 = sphi 0, %s317
      %s318 = sphi 0, %s315
      %s319 = sphi 0, %s318
      %s335 = sphi 0, %s319
      %s341 = sphi 0, %s343
      %s344 = sphi 0, %s341
      %s345 = sphi 0, %s344
      %s361 = sphi 0, %s345
    $region4: #{tpu_custom_call.1} parent=1 // loop_header_branch
      %42 = sbr.rel (%p40) target = $region8
    $region5: #{tpu_custom_call.1} parent=1 // loop_body
      %s44 = ssub.s32 %s39, 1
      %s45 = ssub.s32 %s39, 2
      %s46 = sadd.s32 %s39, 1
      %s47 = ssub.s32 %s39, %s46
      %p48 = scmp.eq.s32.totalorder %s47, 0
      %s50 = sadd.s32 %s49, 1
      %s51 = scalar_select %p48, %s49, %s50
      %p54 = pneg %p48
      %p55 = scmp.eq.s32.totalorder %s39, 1
      %p56 = por %p54, %p55
      %p57 = scmp.ne.s32.totalorder %s49, %s52
      %p58 = scmp.eq.s32.totalorder %s39, 0
      %p59 = por %p57, %p58
      %p60 = scmp.ne.s32.totalorder %s49, %s52
      %p61 = scmp.eq.s32.totalorder %s44, 1
      %p62 = por %p60, %p61
      %p63 = scmp.ne.s32.totalorder %s52, %s53
      %p64 = scmp.eq.s32.totalorder %s44, 0
      %p65 = por %p63, %p64
      %p66 = scmp.ne.s32.totalorder %s52, %s53
      %p67 = scmp.eq.s32.totalorder %s45, 1
      %p68 = por %p66, %p67
      %p70 = scmp.ne.s32.totalorder %s53, %s69
      %p71 = scmp.eq.s32.totalorder %s45, 0
      %p72 = por %p70, %p71
      %s74 = sadd.s32 %s73, 1
      %p77 = scmp.eq.s32.totalorder %s39, 1
      %p78 = scmp.ne.s32.totalorder %s73, %s75
      %p79 = scmp.eq.s32.totalorder %s39, 0
      %p80 = por %p78, %p79
      %p81 = scmp.ne.s32.totalorder %s73, %s75
      %p82 = scmp.eq.s32.totalorder %s44, 1
      %p83 = por %p81, %p82
      %p84 = scmp.ne.s32.totalorder %s75, %s76
      %p85 = scmp.eq.s32.totalorder %s44, 0
      %p86 = por %p84, %p85
      %p87 = scmp.ne.s32.totalorder %s75, %s76
      %p88 = scmp.eq.s32.totalorder %s45, 1
      %p89 = por %p87, %p88
      %p91 = scmp.ne.s32.totalorder %s76, %s90
      %p92 = scmp.eq.s32.totalorder %s45, 0
      %p93 = por %p91, %p92
      %s95 = sadd.s32 %s94, 1
      %p98 = scmp.eq.s32.totalorder %s39, 1
      %p99 = scmp.ne.s32.totalorder %s94, %s96
      %p100 = scmp.eq.s32.totalorder %s39, 0
      %p101 = por %p99, %p100
      %p102 = scmp.ne.s32.totalorder %s94, %s96
      %p103 = scmp.eq.s32.totalorder %s44, 1
      %p104 = por %p102, %p103
      %p105 = scmp.ne.s32.totalorder %s96, %s97
      %p106 = scmp.eq.s32.totalorder %s44, 0
      %p107 = por %p105, %p106
      %p108 = scmp.ne.s32.totalorder %s96, %s97
      %p109 = scmp.eq.s32.totalorder %s45, 1
      %p110 = por %p108, %p109
      %p112 = scmp.ne.s32.totalorder %s97, %s111
      %p113 = scmp.eq.s32.totalorder %s45, 0
      %p114 = por %p112, %p113
      %s115 = ssub.s32 %s39, %s46
      %p116 = scmp.eq.s32.totalorder %s115, 0
      %s118 = sadd.s32 %s117, 1
      %s119 = scalar_select %p116, %s117, %s118
      %p122 = pneg %p116
      %p123 = scmp.eq.s32.totalorder %s39, 1
      %p124 = por %p122, %p123
      %p125 = scmp.ne.s32.totalorder %s117, %s120
      %p126 = scmp.eq.s32.totalorder %s39, 0
      %p127 = por %p125, %p126
      %p128 = scmp.ne.s32.totalorder %s117, %s120
      %p129 = scmp.eq.s32.totalorder %s44, 1
      %p130 = por %p128, %p129
      %p131 = scmp.ne.s32.totalorder %s120, %s121
      %p132 = scmp.eq.s32.totalorder %s44, 0
      %p133 = por %p131, %p132
      %p134 = scmp.ne.s32.totalorder %s120, %s121
      %p135 = scmp.eq.s32.totalorder %s45, 1
      %p136 = por %p134, %p135
      %p138 = scmp.ne.s32.totalorder %s121, %s137
      %p139 = scmp.eq.s32.totalorder %s45, 0
      %p140 = por %p138, %p139
      %s142 = sadd.s32 %s141, 1
      %p145 = scmp.eq.s32.totalorder %s39, 1
      %p146 = scmp.ne.s32.totalorder %s141, %s143
      %p147 = scmp.eq.s32.totalorder %s39, 0
      %p148 = por %p146, %p147
      %p149 = scmp.ne.s32.totalorder %s141, %s143
      %p150 = scmp.eq.s32.totalorder %s44, 1
      %p151 = por %p149, %p150
      %p152 = scmp.ne.s32.totalorder %s143, %s144
      %p153 = scmp.eq.s32.totalorder %s44, 0
      %p154 = por %p152, %p153
      %p155 = scmp.ne.s32.totalorder %s143, %s144
      %p156 = scmp.eq.s32.totalorder %s45, 1
      %p157 = por %p155, %p156
      %p159 = scmp.ne.s32.totalorder %s144, %s158
      %p160 = scmp.eq.s32.totalorder %s45, 0
      %p161 = por %p159, %p160
      %s163 = sadd.s32 %s162, 1
      %p166 = scmp.eq.s32.totalorder %s39, 1
      %p167 = scmp.ne.s32.totalorder %s162, %s164
      %p168 = scmp.eq.s32.totalorder %s39, 0
      %p169 = por %p167, %p168
      %p170 = scmp.ne.s32.totalorder %s162, %s164
      %p171 = scmp.eq.s32.totalorder %s44, 1
      %p172 = por %p170, %p171
      %p173 = scmp.ne.s32.totalorder %s164, %s165
      %p174 = scmp.eq.s32.totalorder %s44, 0
      %p175 = por %p173, %p174
      %p176 = scmp.ne.s32.totalorder %s164, %s165
      %p177 = scmp.eq.s32.totalorder %s45, 1
      %p178 = por %p176, %p177
      %p180 = scmp.ne.s32.totalorder %s165, %s179
      %p181 = scmp.eq.s32.totalorder %s45, 0
      %p182 = por %p180, %p181
      %s183 = ssub.s32 %s39, %s46
      %p184 = scmp.eq.s32.totalorder %s183, 0
      %s186 = sadd.s32 %s185, 1
      %s187 = scalar_select %p184, %s185, %s186
      %p190 = pneg %p184
      %p191 = scmp.eq.s32.totalorder %s39, 1
      %p192 = por %p190, %p191
      %p193 = scmp.ne.s32.totalorder %s185, %s188
      %p194 = scmp.eq.s32.totalorder %s39, 0
      %p195 = por %p193, %p194
      %p196 = scmp.ne.s32.totalorder %s185, %s188
      %p197 = scmp.eq.s32.totalorder %s44, 1
      %p198 = por %p196, %p197
      %p199 = scmp.ne.s32.totalorder %s188, %s189
      %p200 = scmp.eq.s32.totalorder %s44, 0
      %p201 = por %p199, %p200
      %p202 = scmp.ne.s32.totalorder %s188, %s189
      %p203 = scmp.eq.s32.totalorder %s45, 1
      %p204 = por %p202, %p203
      %p206 = scmp.ne.s32.totalorder %s189, %s205
      %p207 = scmp.eq.s32.totalorder %s45, 0
      %p208 = por %p206, %p207
      %s209 = ssub.s32 %s39, %s46
      %p210 = scmp.eq.s32.totalorder %s209, 0
      %s212 = sadd.s32 %s211, 1
      %s213 = scalar_select %p210, %s211, %s212
      %p216 = pneg %p210
      %p217 = scmp.eq.s32.totalorder %s39, 1
      %p218 = por %p216, %p217
      %p219 = scmp.ne.s32.totalorder %s211, %s214
      %p220 = scmp.eq.s32.totalorder %s39, 0
      %p221 = por %p219, %p220
      %p222 = scmp.ne.s32.totalorder %s211, %s214
      %p223 = scmp.eq.s32.totalorder %s44, 1
      %p224 = por %p222, %p223
      %p225 = scmp.ne.s32.totalorder %s214, %s215
      %p226 = scmp.eq.s32.totalorder %s44, 0
      %p227 = por %p225, %p226
      %p228 = scmp.ne.s32.totalorder %s214, %s215
      %p229 = scmp.eq.s32.totalorder %s45, 1
      %p230 = por %p228, %p229
      %p232 = scmp.ne.s32.totalorder %s215, %s231
      %p233 = scmp.eq.s32.totalorder %s45, 0
      %p234 = por %p232, %p233
      %s235 = ssub.s32 %s39, %s46
      %p236 = scmp.eq.s32.totalorder %s235, 0
      %s238 = sadd.s32 %s237, 1
      %s239 = scalar_select %p236, %s237, %s238
      %p242 = pneg %p236
      %p243 = scmp.eq.s32.totalorder %s39, 1
      %p244 = por %p242, %p243
      %p245 = scmp.ne.s32.totalorder %s237, %s240
      %p246 = scmp.eq.s32.totalorder %s39, 0
      %p247 = por %p245, %p246
      %p248 = scmp.ne.s32.totalorder %s237, %s240
      %p249 = scmp.eq.s32.totalorder %s44, 1
      %p250 = por %p248, %p249
      %p251 = scmp.ne.s32.totalorder %s240, %s241
      %p252 = scmp.eq.s32.totalorder %s44, 0
      %p253 = por %p251, %p252
      %p254 = scmp.ne.s32.totalorder %s240, %s241
      %p255 = scmp.eq.s32.totalorder %s45, 1
      %p256 = por %p254, %p255
      %p258 = scmp.ne.s32.totalorder %s241, %s257
      %p259 = scmp.eq.s32.totalorder %s45, 0
      %p260 = por %p258, %p259
      %s261 = ssub.s32 %s39, %s46
      %p262 = scmp.eq.s32.totalorder %s261, 0
      %s264 = sadd.s32 %s263, 1
      %s265 = scalar_select %p262, %s263, %s264
      %p268 = pneg %p262
      %p269 = scmp.eq.s32.totalorder %s39, 1
      %p270 = por %p268, %p269
      %p271 = scmp.ne.s32.totalorder %s263, %s266
      %p272 = scmp.eq.s32.totalorder %s39, 0
      %p273 = por %p271, %p272
      %p274 = scmp.ne.s32.totalorder %s263, %s266
      %p275 = scmp.eq.s32.totalorder %s44, 1
      %p276 = por %p274, %p275
      %p277 = scmp.ne.s32.totalorder %s266, %s267
      %p278 = scmp.eq.s32.totalorder %s44, 0
      %p279 = por %p277, %p278
      %p280 = scmp.ne.s32.totalorder %s266, %s267
      %p281 = scmp.eq.s32.totalorder %s45, 1
      %p282 = por %p280, %p281
      %p284 = scmp.ne.s32.totalorder %s267, %s283
      %p285 = scmp.eq.s32.totalorder %s45, 0
      %p286 = por %p284, %p285
      %s287 = ssub.s32 %s39, %s46
      %p288 = scmp.eq.s32.totalorder %s287, 0
      %s290 = sadd.s32 %s289, 1
      %s291 = scalar_select %p288, %s289, %s290
      %p294 = pneg %p288
      %p295 = scmp.eq.s32.totalorder %s39, 1
      %p296 = por %p294, %p295
      %p297 = scmp.ne.s32.totalorder %s289, %s292
      %p298 = scmp.eq.s32.totalorder %s39, 0
      %p299 = por %p297, %p298
      %p300 = scmp.ne.s32.totalorder %s289, %s292
      %p301 = scmp.eq.s32.totalorder %s44, 1
      %p302 = por %p300, %p301
      %p303 = scmp.ne.s32.totalorder %s292, %s293
      %p304 = scmp.eq.s32.totalorder %s44, 0
      %p305 = por %p303, %p304
      %p306 = scmp.ne.s32.totalorder %s292, %s293
      %p307 = scmp.eq.s32.totalorder %s45, 1
      %p308 = por %p306, %p307
      %p310 = scmp.ne.s32.totalorder %s293, %s309
      %p311 = scmp.eq.s32.totalorder %s45, 0
      %p312 = por %p310, %p311
      %s313 = ssub.s32 %s39, %s46
      %p314 = scmp.eq.s32.totalorder %s313, 0
      %s316 = sadd.s32 %s315, 1
      %s317 = scalar_select %p314, %s315, %s316
      %p320 = pneg %p314
      %p321 = scmp.eq.s32.totalorder %s39, 1
      %p322 = por %p320, %p321
      %p323 = scmp.ne.s32.totalorder %s315, %s318
      %p324 = scmp.eq.s32.totalorder %s39, 0
      %p325 = por %p323, %p324
      %p326 = scmp.ne.s32.totalorder %s315, %s318
      %p327 = scmp.eq.s32.totalorder %s44, 1
      %p328 = por %p326, %p327
      %p329 = scmp.ne.s32.totalorder %s318, %s319
      %p330 = scmp.eq.s32.totalorder %s44, 0
      %p331 = por %p329, %p330
      %p332 = scmp.ne.s32.totalorder %s318, %s319
      %p333 = scmp.eq.s32.totalorder %s45, 1
      %p334 = por %p332, %p333
      %p336 = scmp.ne.s32.totalorder %s319, %s335
      %p337 = scmp.eq.s32.totalorder %s45, 0
      %p338 = por %p336, %p337
      %s339 = ssub.s32 %s39, %s46
      %p340 = scmp.eq.s32.totalorder %s339, 0
      %s342 = sadd.s32 %s341, 1
      %s343 = scalar_select %p340, %s341, %s342
      %p346 = pneg %p340
      %p347 = scmp.eq.s32.totalorder %s39, 1
      %p348 = por %p346, %p347
      %p349 = scmp.ne.s32.totalorder %s341, %s344
      %p350 = scmp.eq.s32.totalorder %s39, 0
      %p351 = por %p349, %p350
      %p352 = scmp.ne.s32.totalorder %s341, %s344
      %p353 = scmp.eq.s32.totalorder %s44, 1
      %p354 = por %p352, %p353
      %p355 = scmp.ne.s32.totalorder %s344, %s345
      %p356 = scmp.eq.s32.totalorder %s44, 0
      %p357 = por %p355, %p356
      %p358 = scmp.ne.s32.totalorder %s344, %s345
      %p359 = scmp.eq.s32.totalorder %s45, 1
      %p360 = por %p358, %p359
      %p362 = scmp.ne.s32.totalorder %s345, %s361
      %p363 = scmp.eq.s32.totalorder %s45, 0
      %p364 = por %p362, %p363
      %p365 = scmp.le.s32.totalorder 1, %s39
      %p366 = scmp.lt.s32.totalorder %s39, 3
      %p367 = pnand %p365, %p366
      %p368 = pneg %p367
      // Predicated region
      $region9: #{tpu_custom_call.1} parent=5 // pred_check
        _
      $region10: #{tpu_custom_call.1} parent=5 // pred_check_branch
        %370 = sbr.rel (%p367) target = $region12
      $region11: #{tpu_custom_call.1} parent=5 // pred_region
        %s371 = ssub.s32 %s39, 1
        // Predicated region
        $region13: #{tpu_custom_call.1} parent=11 // pred_check
          %p372 = pneg %p86
        $region14: #{tpu_custom_call.1} parent=11 // pred_check_branch
          %374 = sbr.rel (%p372) target = $region16
        $region15: #{tpu_custom_call.1} parent=11 // pred_region
          %376 = vsyncadd [#allocation7], 0
          %s377 = sshll.u32 %s1, 4
          %s378 = int_to_ptr.hbm [resolvable:$true] %s377
          %s379 = sshll.u32 [#allocation6], 4
          %s380 = int_to_ptr.vmem [resolvable:$true] %s379
          %385 = dma.hbm_to_vmem [thread:$0]  %s378, 9216, %s380, [#allocation7], 64, 64, 4
        $region16: #{tpu_custom_call.1} parent=11 // pred_fallthru
          _
        // Predicated region
        $region17: #{tpu_custom_call.1} parent=11 // pred_check
          %p386 = pneg %p107
        $region18: #{tpu_custom_call.1} parent=11 // pred_check_branch
          %388 = sbr.rel (%p386) target = $region20
        $region19: #{tpu_custom_call.1} parent=11 // pred_region
          %390 = vsyncadd [#allocation7], 0
          %s391 = sshll.u32 %s2, 4
          %s392 = int_to_ptr.hbm [resolvable:$true] %s391
          %s393 = sshll.u32 [#allocation8], 4
          %s394 = int_to_ptr.vmem [resolvable:$true] %s393
          %399 = dma.hbm_to_vmem [thread:$0]  %s392, 2560, %s394, [#allocation7], 128, 128, 8
        $region20: #{tpu_custom_call.1} parent=11 // pred_fallthru
          _
        // Predicated region
        $region21: #{tpu_custom_call.1} parent=11 // pred_check
          %p400 = pneg %p154
        $region22: #{tpu_custom_call.1} parent=11 // pred_check_branch
          %402 = sbr.rel (%p400) target = $region24
        $region23: #{tpu_custom_call.1} parent=11 // pred_region
          %404 = vsyncadd [#allocation10], 0
          %s405 = sshll.u32 %s4, 4
          %s406 = int_to_ptr.hbm [resolvable:$true] %s405
          %s407 = sshll.u32 [#allocation11], 4
          %s408 = int_to_ptr.vmem [resolvable:$true] %s407
          %413 = dma.hbm_to_vmem [thread:$0]  %s406, 9216, %s408, [#allocation10], 64, 64, 4
        $region24: #{tpu_custom_call.1} parent=11 // pred_fallthru
          _
        // Predicated region
        $region25: #{tpu_custom_call.1} parent=11 // pred_check
          %p414 = pneg %p175
        $region26: #{tpu_custom_call.1} parent=11 // pred_check_branch
          %416 = sbr.rel (%p414) target = $region28
        $region27: #{tpu_custom_call.1} parent=11 // pred_region
          %418 = vsyncadd [#allocation13], 0
          %s419 = sshll.u32 %s5, 4
          %s420 = int_to_ptr.hbm [resolvable:$true] %s419
          %s421 = sshll.u32 [#allocation12], 4
          %s422 = int_to_ptr.vmem [resolvable:$true] %s421
          %427 = dma.hbm_to_vmem [thread:$0]  %s420, 2560, %s422, [#allocation13], 128, 128, 8
        $region28: #{tpu_custom_call.1} parent=11 // pred_fallthru
          _
      $region12: #{tpu_custom_call.1} parent=5 // pred_fallthru
        _
      %p428 = scmp.lt.s32.totalorder %s39, 2
      // Predicated region
      $region29: #{tpu_custom_call.1} parent=5 // pred_check
        %p429 = pneg %p428
      $region30: #{tpu_custom_call.1} parent=5 // pred_check_branch
        %431 = sbr.rel (%p429) target = $region32
      $region31: #{tpu_custom_call.1} parent=5 // pred_region
        // Predicated region
        $region33: #{tpu_custom_call.1} parent=31 // pred_check
          %p432 = pneg %p59
        $region34: #{tpu_custom_call.1} parent=31 // pred_check_branch
          %434 = sbr.rel (%p432) target = $region36
        $region35: #{tpu_custom_call.1} parent=31 // pred_region
          %s435 = sand.u32 %s49, 1
          %s436 = scalar_lea.sflag [#allocation4], %s435
          %s437 = sand.u32 %s49, 1
          %s438 = smul.addr %s437, 16
          %s439 = scalar_lea.vmem [#allocation3], %s438
          %441 = vsyncadd %s436, 0
          %s442 = smul.addr %s39, 2
          %s443 = smul.addr %s442, 8
          %s444 = scalar_lea.hbm %s0, %s443
          %s446 = sshll.u32 %s444, 4
          %s447 = int_to_ptr.hbm [resolvable:$true] %s446
          %s448 = sshll.u32 %s439, 4
          %s449 = int_to_ptr.vmem [resolvable:$true] %s448
          %451 = dma.hbm_to_vmem [thread:$0]  %s447, 256, %s449, %s436
        $region36: #{tpu_custom_call.1} parent=31 // pred_fallthru
          _
        // Predicated region
        $region37: #{tpu_custom_call.1} parent=31 // pred_check
          %p452 = pneg %p127
        $region38: #{tpu_custom_call.1} parent=31 // pred_check_branch
          %454 = sbr.rel (%p452) target = $region40
        $region39: #{tpu_custom_call.1} parent=31 // pred_region
          %s455 = sand.u32 %s39, 1
          %s456 = scalar_lea.sflag [#allocation10], %s455
          %s457 = sand.u32 %s117, 1
          %s458 = smul.addr %s457, 32
          %s459 = scalar_lea.vmem [#allocation9], %s458
          %461 = vsyncadd %s456, 0
          %s462 = smul.addr %s39, 4
          %s463 = smul.addr %s462, 8
          %s464 = scalar_lea.hbm %s3, %s463
          %s465 = sshll.u32 %s464, 4
          %s466 = int_to_ptr.hbm [resolvable:$true] %s465
          %s467 = sshll.u32 %s459, 4
          %s468 = int_to_ptr.vmem [resolvable:$true] %s467
          %473 = dma.hbm_to_vmem [thread:$0]  %s466, 512, %s468, %s456, 256, 256, 16
        $region40: #{tpu_custom_call.1} parent=31 // pred_fallthru
          _
      $region32: #{tpu_custom_call.1} parent=5 // pred_fallthru
        _
      %p474 = scmp.le.s32.totalorder 1, %s39
      %p475 = scmp.lt.s32.totalorder %s39, 3
      %p476 = pnand %p474, %p475
      %p477 = pneg %p476
      // Predicated region
      $region41: #{tpu_custom_call.1} parent=5 // pred_check
        _
      $region42: #{tpu_custom_call.1} parent=5 // pred_check_branch
        %479 = sbr.rel (%p476) target = $region44
      $region43: #{tpu_custom_call.1} parent=5 // pred_region
        %s480 = ssub.s32 %s39, 1
        %s481 = sand.u32 %s52, 1
        %s482 = scalar_lea.sflag [#allocation4], %s481
        %s483 = sand.u32 %s52, 1
        %s484 = smul.addr %s483, 16
        %s485 = scalar_lea.vmem [#allocation3], %s484
        // Predicated region
        $region45: #{tpu_custom_call.1} parent=43 // pred_check
          %p486 = pneg %p65
        $region46: #{tpu_custom_call.1} parent=43 // pred_check_branch
          %488 = sbr.rel (%p486) target = $region48
        $region47: #{tpu_custom_call.1} parent=43 // pred_region
          %490 = dma.done %s482, 256
        $region48: #{tpu_custom_call.1} parent=43 // pred_fallthru
          _
        // Predicated region
        $region49: #{tpu_custom_call.1} parent=43 // pred_check
          %p491 = pneg %p86
        $region50: #{tpu_custom_call.1} parent=43 // pred_check_branch
          %493 = sbr.rel (%p491) target = $region52
        $region51: #{tpu_custom_call.1} parent=43 // pred_region
          %495 = dma.done [#allocation7], 9216
        $region52: #{tpu_custom_call.1} parent=43 // pred_fallthru
          _
        // Predicated region
        $region53: #{tpu_custom_call.1} parent=43 // pred_check
          %p496 = pneg %p107
        $region54: #{tpu_custom_call.1} parent=43 // pred_check_branch
          %498 = sbr.rel (%p496) target = $region56
        $region55: #{tpu_custom_call.1} parent=43 // pred_region
          %500 = dma.done [#allocation7], 2560
        $region56: #{tpu_custom_call.1} parent=43 // pred_fallthru
          _
        %s501 = sand.u32 %s44, 1
        %s502 = scalar_lea.sflag [#allocation10], %s501
        %s503 = sand.u32 %s120, 1
        %s504 = smul.addr %s503, 32
        %s505 = scalar_lea.vmem [#allocation9], %s504
        // Predicated region
        $region57: #{tpu_custom_call.1} parent=43 // pred_check
          %p506 = pneg %p133
        $region58: #{tpu_custom_call.1} parent=43 // pred_check_branch
          %508 = sbr.rel (%p506) target = $region60
        $region59: #{tpu_custom_call.1} parent=43 // pred_region
          %510 = dma.done %s502, 512
        $region60: #{tpu_custom_call.1} parent=43 // pred_fallthru
          _
        // Predicated region
        $region61: #{tpu_custom_call.1} parent=43 // pred_check
          %p511 = pneg %p154
        $region62: #{tpu_custom_call.1} parent=43 // pred_check_branch
          %513 = sbr.rel (%p511) target = $region64
        $region63: #{tpu_custom_call.1} parent=43 // pred_region
          %515 = dma.done [#allocation10], 9216
        $region64: #{tpu_custom_call.1} parent=43 // pred_fallthru
          _
        // Predicated region
        $region65: #{tpu_custom_call.1} parent=43 // pred_check
          %p516 = pneg %p175
        $region66: #{tpu_custom_call.1} parent=43 // pred_check_branch
          %518 = sbr.rel (%p516) target = $region68
        $region67: #{tpu_custom_call.1} parent=43 // pred_region
          %520 = dma.done [#allocation13], 2560
        $region68: #{tpu_custom_call.1} parent=43 // pred_fallthru
          _
        %s521 = sand.u32 %s52, 1
        %s522 = scalar_lea.sflag [#allocation4], %s521
        %s523 = sand.u32 %s52, 1
        %s524 = smul.addr %s523, 16
        %s525 = scalar_lea.vmem [#allocation3], %s524
        %p526 = pneg %p65
        %p527 = pneg %p62
        %p528 = pneg %p86
        %p529 = pneg %p83
        %p530 = pneg %p107
        %p531 = pneg %p104
        %s532 = sand.u32 %s44, 1
        %s533 = scalar_lea.sflag [#allocation10], %s532
        %s534 = sand.u32 %s120, 1
        %s535 = smul.addr %s534, 32
        %s536 = scalar_lea.vmem [#allocation9], %s535
        %p537 = pneg %p133
        %p538 = pneg %p130
        %p539 = pneg %p154
        %p540 = pneg %p151
        %p541 = pneg %p175
        %p542 = pneg %p172
        %p543 = pneg %p201
        %p544 = pneg %p198
        %s545 = sand.u32 %s188, 1
        %s546 = scalar_lea.sflag [#allocation5], %s545
        %s547 = sand.u32 %s188, 1
        %s548 = scalar_lea.vmem [#allocation14], %s547
        %p549 = pneg %p227
        %p550 = pneg %p224
        %s551 = sand.u32 %s44, 1
        %s552 = scalar_lea.sflag [#allocation16], %s551
        %s553 = sand.u32 %s214, 1
        %s554 = smul.addr %s553, 4
        %s555 = scalar_lea.vmem [#allocation15], %s554
        %p556 = pneg %p253
        %p557 = pneg %p250
        %s558 = sand.u32 %s44, 1
        %s559 = scalar_lea.sflag [#allocation16], %s558
        %s560 = sand.u32 %s240, 1
        %s561 = smul.addr %s560, 2
        %s562 = scalar_lea.vmem [#allocation17], %s561
        %p563 = pneg %p279
        %p564 = pneg %p276
        %s565 = sand.u32 %s44, 1
        %s566 = scalar_lea.sflag [#allocation19], %s565
        %s567 = sand.u32 %s266, 1
        %s568 = scalar_lea.vmem [#allocation18], %s567
        %p569 = pneg %p305
        %p570 = pneg %p302
        %s571 = sand.u32 %s44, 1
        %s572 = scalar_lea.sflag [#allocation19], %s571
        %s573 = sand.u32 %s292, 1
        %s574 = smul.addr %s573, 8
        %s575 = scalar_lea.vmem [#allocation20], %s574
        %p576 = pneg %p331
        %p577 = pneg %p328
        %s578 = sand.u32 %s44, 1
        %s579 = scalar_lea.sflag [#allocation22], %s578
        %s580 = sand.u32 %s318, 1
        %s581 = smul.addr %s580, 4
        %s582 = scalar_lea.vmem [#allocation21], %s581
        %p583 = pneg %p357
        %p584 = pneg %p354
        %s585 = sand.u32 %s44, 1
        %s586 = scalar_lea.sflag [#allocation22], %s585
        %s587 = sand.u32 %s344, 1
        %s588 = smul.addr %s587, 2
        %s589 = scalar_lea.vmem [#allocation23], %s588
        %590 = vst [vmem:[#allocation2] sm:$0x1] 0.0
        %v591 = vld [vmem:[#allocation8] sm:$0xff]
        %v592 = vld [vmem:[#allocation8 + $0x8] sm:$0xff]
        %v593 = vld [vmem:[#allocation8 + $0x10] sm:$0xff]
        %v594 = vld [vmem:[#allocation8 + $0x18] sm:$0xff]
        %v595 = vld [vmem:[#allocation8 + $0x20] sm:$0xff]
        %v596 = vld [vmem:[#allocation8 + $0x28] sm:$0xff]
        %v597 = vld [vmem:[#allocation8 + $0x30] sm:$0xff]
        %v598 = vld [vmem:[#allocation8 + $0x38] sm:$0xff]
        %v599 = vld [vmem:[#allocation8 + $0x40] sm:$0xff]
        %v600 = vld [vmem:[#allocation8 + $0x48] sm:$0xff]
        %v601 = vld [vmem:[#allocation8 + $0x50] sm:$0xff]
        %v602 = vld [vmem:[#allocation8 + $0x58] sm:$0xff]
        %v603 = vld [vmem:[#allocation8 + $0x60] sm:$0xff]
        %v604 = vld [vmem:[#allocation8 + $0x68] sm:$0xff]
        %v605 = vld [vmem:[#allocation8 + $0x70] sm:$0xff]
        %v606 = vld [vmem:[#allocation8 + $0x78] sm:$0xff]
        %v607 = vld [vmem:[#allocation8 + $0x80] sm:$0xff]
        %v608 = vld [vmem:[#allocation8 + $0x88] sm:$0xff]
        %v609 = vld [vmem:[%s485] sm:$0xff]
        %v610 = vld [vmem:[%s485 + $0x8] sm:$0xff]
        %v611 = vld [vmem:[#allocation8 + $0x90] sm:$0x1]
        %v612 = vperm.slane %v611, 0
        %vm613 = vcmask 130048
        %v615 = vsel %vm613, %v610, 0
        %617 = vmatpush.msra.mxu0 %v606
        %618 = vmatpush.msra.mxu0 %v605
        %619 = vmatpush.msra.mxu0 %v604
        %620 = vmatpush.msra.mxu0 %v603
        %621 = vmatpush.msra.mxu0 %v602
        %622 = vmatpush.msra.mxu0 %v601
        %623 = vmatpush.msra.mxu0 %v600
        %624 = vmatpush.msra.mxu0 %v599
        %625 = vmatpush.msra.mxu0 %v598
        %626 = vmatpush.msra.mxu0 %v597
        %627 = vmatpush.msra.mxu0 %v596
        %628 = vmatpush.msra.mxu0 %v595
        %629 = vmatpush.msra.mxu0 %v594
        %630 = vmatpush.msra.mxu0 %v593
        %631 = vmatpush.msra.mxu0 %v592
        %632 = vmatpush.msra.mxu0 %v591
        %633 = vmatmul.f32.gmra.mxu0 %v609
        %v634 = vpop.f32.mrf.mxu0
        %v635 = vadd.f32 %v612, %v634
        %636 = vdwg.mxu0
        %637 = vmatpush.msra.mxu0 0.0
        %638 = vmatpush.msra.mxu0 0.0
        %639 = vmatpush.msra.mxu0 0.0
        %640 = vmatpush.msra.mxu0 0.0
        %641 = vmatpush.msra.mxu0 0.0
        %642 = vmatpush.msra.mxu0 0.0
        %643 = vmatpush.msra.mxu0 0.0
        %644 = vmatpush.msra.mxu0 0.0
        %645 = vmatpush.msra.mxu0 0.0
        %646 = vmatpush.msra.mxu0 0.0
        %647 = vmatpush.msra.mxu0 0.0
        %648 = vmatpush.msra.mxu0 0.0
        %649 = vmatpush.msra.mxu0 0.0
        %650 = vmatpush.msra.mxu0 0.0
        %651 = vmatpush.msra.mxu0 %v608
        %652 = vmatpush.msra.mxu0 %v607
        %653 = vmatmul.f32.gmra.mxu0 %v615
        %v654 = vpop.f32.mrf.mxu0
        %v655 = vadd.f32 %v635, %v654
        %656 = vdwg.mxu0
        %657 = vst [vmem:[#allocation2 + $0x1] sm:$0xff] %v655
        %v658 = vld [vmem:[#allocation8 + $0x91] sm:$0x1]
        %v659 = vld [vmem:[#allocation2] ss:$2 sm:$0xf]
        %v660 = vpack.c.bf16 %v659, %v659
        %s661 = scalar_lea.vmem [#allocation2], 1
        %v662 = vld [vmem:[%s661] ss:$2 sm:$0xf]
        %v663 = vpack.c.bf16 %v662, %v662
        %s664 = scalar_lea.vmem [#allocation2], 2
        %v665 = vld [vmem:[%s664] ss:$2 sm:$0xf]
        %v666 = vpack.c.bf16 %v665, %v665
        %v667 = vld [vmem:[#allocation6] sm:$0xf]
        %v668 = vld [vmem:[#allocation6 + $0x4] sm:$0xf]
        %v669 = vld [vmem:[#allocation6 + $0x8] sm:$0xf]
        %v670 = vld [vmem:[#allocation6 + $0xc] sm:$0xf]
        %v671 = vld [vmem:[#allocation6 + $0x10] sm:$0xf]
        %v672 = vld [vmem:[#allocation6 + $0x14] sm:$0xf]
        %v673 = vld [vmem:[#allocation6 + $0x18] sm:$0xf]
        %v674 = vld [vmem:[#allocation6 + $0x1c] sm:$0xf]
        %v675 = vld [vmem:[#allocation6 + $0x20] sm:$0xf]
        %v676 = vld [vmem:[#allocation6 + $0x24] sm:$0xf]
        %v677 = vld [vmem:[#allocation6 + $0x28] sm:$0xf]
        %v678 = vld [vmem:[#allocation6 + $0x2c] sm:$0xf]
        %v679 = vld [vmem:[#allocation6 + $0x30] sm:$0xf]
        %v680 = vld [vmem:[#allocation6 + $0x34] sm:$0xf]
        %v681 = vld [vmem:[#allocation6 + $0x38] sm:$0xf]
        %v682 = vld [vmem:[#allocation6 + $0x3c] sm:$0xf]
        %v683 = vld [vmem:[#allocation6 + $0x40] sm:$0xf]
        %v684 = vld [vmem:[#allocation6 + $0x44] sm:$0xf]
        %v685 = vld [vmem:[#allocation6 + $0x48] sm:$0xf]
        %v686 = vld [vmem:[#allocation6 + $0x4c] sm:$0xf]
        %v687 = vld [vmem:[#allocation6 + $0x50] sm:$0xf]
        %v688 = vld [vmem:[#allocation6 + $0x54] sm:$0xf]
        %v689 = vld [vmem:[#allocation6 + $0x58] sm:$0xf]
        %v690 = vld [vmem:[#allocation6 + $0x5c] sm:$0xf]
        %v691 = vld [vmem:[#allocation6 + $0x60] sm:$0xf]
        %v692 = vld [vmem:[#allocation6 + $0x64] sm:$0xf]
        %v693 = vld [vmem:[#allocation6 + $0x68] sm:$0xf]
        %v694 = vld [vmem:[#allocation6 + $0x6c] sm:$0xf]
        %v695 = vld [vmem:[#allocation6 + $0x70] sm:$0xf]
        %v696 = vld [vmem:[#allocation6 + $0x74] sm:$0xf]
        %v697 = vld [vmem:[#allocation6 + $0x78] sm:$0xf]
        %v698 = vld [vmem:[#allocation6 + $0x7c] sm:$0xf]
        %v699 = vld [vmem:[#allocation6 + $0x80] sm:$0xf]
        %v700 = vld [vmem:[#allocation6 + $0x84] sm:$0xf]
        %v701 = vld [vmem:[#allocation6 + $0x88] sm:$0xf]
        %v702 = vld [vmem:[#allocation6 + $0x8c] sm:$0xf]
        %v703 = vld [vmem:[#allocation6 + $0x90] sm:$0xf]
        %v704 = vld [vmem:[#allocation6 + $0x94] sm:$0xf]
        %v705 = vld [vmem:[#allocation6 + $0x98] sm:$0xf]
        %v706 = vld [vmem:[#allocation6 + $0x9c] sm:$0xf]
        %v707 = vld [vmem:[#allocation6 + $0xa0] sm:$0xf]
        %v708 = vld [vmem:[#allocation6 + $0xa4] sm:$0xf]
        %v709 = vld [vmem:[#allocation6 + $0xa8] sm:$0xf]
        %v710 = vld [vmem:[#allocation6 + $0xac] sm:$0xf]
        %v711 = vld [vmem:[#allocation6 + $0xb0] sm:$0xf]
        %v712 = vld [vmem:[#allocation6 + $0xb4] sm:$0xf]
        %v713 = vld [vmem:[#allocation6 + $0xb8] sm:$0xf]
        %v714 = vld [vmem:[#allocation6 + $0xbc] sm:$0xf]
        %v731 = vunpack.c.l.b16 %v699
        %v732 = vunpack.c.l.b16 %v700
        %v733 = vunpack.c.l.b16 %v701
        %v734 = vunpack.c.l.b16 %v702
        %v735 = vunpack.c.l.b16 %v703
        %v736 = vunpack.c.l.b16 %v704
        %v737 = vunpack.c.l.b16 %v705
        %v738 = vunpack.c.l.b16 %v706
        %v739 = vunpack.c.l.b16 %v707
        %v740 = vunpack.c.l.b16 %v708
        %v741 = vunpack.c.l.b16 %v709
        %v742 = vunpack.c.l.b16 %v710
        %v743 = vunpack.c.l.b16 %v711
        %v744 = vunpack.c.l.b16 %v712
        %v745 = vunpack.c.l.b16 %v713
        %v746 = vunpack.c.l.b16 %v714
        %v747 = vpack.c.b16 %v732, %v731
        %v748 = vpack.c.b16 %v734, %v733
        %v749 = vpack.c.b16 %v736, %v735
        %v750 = vpack.c.b16 %v738, %v737
        %v751 = vpack.c.b16 %v740, %v739
        %v752 = vpack.c.b16 %v742, %v741
        %v753 = vpack.c.b16 %v744, %v743
        %v754 = vpack.c.b16 %v746, %v745
        %763 = vmatpush.bf16.msra.mxu0 %v754
        %764 = vmatpush.bf16.msra.mxu0 %v753
        %765 = vmatpush.bf16.msra.mxu0 %v752
        %766 = vmatpush.bf16.msra.mxu0 %v751
        %767 = vmatpush.bf16.msra.mxu0 %v750
        %768 = vmatpush.bf16.msra.mxu0 %v749
        %769 = vmatpush.bf16.msra.mxu0 %v748
        %770 = vmatpush.bf16.msra.mxu0 %v747
        %771 = vmatmul.bf16.gmra.mxu0 %v666
        %v772 = vpop.f32.mrf.mxu0
        %v773 = vadd.f32 0.0, %v772
        %v774 = vpop.f32.mrf.mxu0
        %775 = vdwg.mxu0
        %v792 = vunpack.c.l.b16 %v683
        %v793 = vunpack.c.l.b16 %v684
        %v794 = vunpack.c.l.b16 %v685
        %v795 = vunpack.c.l.b16 %v686
        %v796 = vunpack.c.l.b16 %v687
        %v797 = vunpack.c.l.b16 %v688
        %v798 = vunpack.c.l.b16 %v689
        %v799 = vunpack.c.l.b16 %v690
        %v800 = vunpack.c.l.b16 %v691
        %v801 = vunpack.c.l.b16 %v692
        %v802 = vunpack.c.l.b16 %v693
        %v803 = vunpack.c.l.b16 %v694
        %v804 = vunpack.c.l.b16 %v695
        %v805 = vunpack.c.l.b16 %v696
        %v806 = vunpack.c.l.b16 %v697
        %v807 = vunpack.c.l.b16 %v698
        %v808 = vpack.c.b16 %v793, %v792
        %v809 = vpack.c.b16 %v795, %v794
        %v810 = vpack.c.b16 %v797, %v796
        %v811 = vpack.c.b16 %v799, %v798
        %v812 = vpack.c.b16 %v801, %v800
        %v813 = vpack.c.b16 %v803, %v802
        %v814 = vpack.c.b16 %v805, %v804
        %v815 = vpack.c.b16 %v807, %v806
        %824 = vmatpush.bf16.msra.mxu0 %v815
        %825 = vmatpush.bf16.msra.mxu0 %v814
        %826 = vmatpush.bf16.msra.mxu0 %v813
        %827 = vmatpush.bf16.msra.mxu0 %v812
        %828 = vmatpush.bf16.msra.mxu0 %v811
        %829 = vmatpush.bf16.msra.mxu0 %v810
        %830 = vmatpush.bf16.msra.mxu0 %v809
        %831 = vmatpush.bf16.msra.mxu0 %v808
        %832 = vmatmul.bf16.gmra.mxu0 %v663
        %v833 = vpop.f32.mrf.mxu0
        %v834 = vadd.f32 %v773, %v833
        %v835 = vpop.f32.mrf.mxu0
        %836 = vdwg.mxu0
        %v853 = vunpack.c.l.b16 %v667
        %v854 = vunpack.c.l.b16 %v668
        %v855 = vunpack.c.l.b16 %v669
        %v856 = vunpack.c.l.b16 %v670
        %v857 = vunpack.c.l.b16 %v671
        %v858 = vunpack.c.l.b16 %v672
        %v859 = vunpack.c.l.b16 %v673
        %v860 = vunpack.c.l.b16 %v674
        %v861 = vunpack.c.l.b16 %v675
        %v862 = vunpack.c.l.b16 %v676
        %v863 = vunpack.c.l.b16 %v677
        %v864 = vunpack.c.l.b16 %v678
        %v865 = vunpack.c.l.b16 %v679
        %v866 = vunpack.c.l.b16 %v680
        %v867 = vunpack.c.l.b16 %v681
        %v868 = vunpack.c.l.b16 %v682
        %v869 = vpack.c.b16 %v854, %v853
        %v870 = vpack.c.b16 %v856, %v855
        %v871 = vpack.c.b16 %v858, %v857
        %v872 = vpack.c.b16 %v860, %v859
        %v873 = vpack.c.b16 %v862, %v861
        %v874 = vpack.c.b16 %v864, %v863
        %v875 = vpack.c.b16 %v866, %v865
        %v876 = vpack.c.b16 %v868, %v867
        %885 = vmatpush.bf16.msra.mxu0 %v876
        %886 = vmatpush.bf16.msra.mxu0 %v875
        %887 = vmatpush.bf16.msra.mxu0 %v874
        %888 = vmatpush.bf16.msra.mxu0 %v873
        %889 = vmatpush.bf16.msra.mxu0 %v872
        %890 = vmatpush.bf16.msra.mxu0 %v871
        %891 = vmatpush.bf16.msra.mxu0 %v870
        %892 = vmatpush.bf16.msra.mxu0 %v869
        %893 = vmatmul.bf16.gmra.mxu0 %v660
        %v894 = vpop.f32.mrf.mxu0
        %v895 = vadd.f32 0.0, %v894
        %v896 = vpop.f32.mrf.mxu0
        %897 = vdwg.mxu0
        %v898 = vadd.f32 %v834, %v895
        %v899 = vperm.slane %v658, 0
        %v900 = vadd.f32 %v898, %v899
        %vm901 = vcmp.ge.f32.partialorder %v900, 0.0
        %v902 = vmul.f32 %v900, 0.2
        %v903 = vsel %vm901, %v900, %v902
        %904 = vst [vmem:[%s555] sm:$0xf] %v903
        %905 = vst [vmem:[#allocation2 + $0x1] sm:$0xf] %v903
        %v906 = vld [vmem:[#allocation8 + $0x92] sm:$0x1]
        %v907 = vld [vmem:[#allocation8 + $0x93] sm:$0x1]
        %v908 = vld [vmem:[#allocation8 + $0x94] sm:$0x1]
        %v909 = vld [vmem:[#allocation2] ss:$2 sm:$0x3]
        %v910 = vpack.c.bf16 %v909, %v909
        %v911 = vld [vmem:[%s661] ss:$2 sm:$0x3]
        %v912 = vpack.c.bf16 %v911, %v911
        %v913 = vld [vmem:[%s664] ss:$2 sm:$0x3]
        %v914 = vpack.c.bf16 %v913, %v913
        %v915 = vld [vmem:[#allocation6 + $0xc0] sm:$0xf]
        %v916 = vld [vmem:[#allocation6 + $0xc4] sm:$0xf]
        %v917 = vld [vmem:[#allocation6 + $0xc8] sm:$0xf]
        %v918 = vld [vmem:[#allocation6 + $0xcc] sm:$0xf]
        %v919 = vld [vmem:[#allocation6 + $0xd0] sm:$0xf]
        %v920 = vld [vmem:[#allocation6 + $0xd4] sm:$0xf]
        %v921 = vld [vmem:[#allocation6 + $0xd8] sm:$0xf]
        %v922 = vld [vmem:[#allocation6 + $0xdc] sm:$0xf]
        %v923 = vld [vmem:[#allocation6 + $0xe0] sm:$0xf]
        %v924 = vld [vmem:[#allocation6 + $0xe4] sm:$0xf]
        %v925 = vld [vmem:[#allocation6 + $0xe8] sm:$0xf]
        %v926 = vld [vmem:[#allocation6 + $0xec] sm:$0xf]
        %v927 = vld [vmem:[#allocation6 + $0xf0] sm:$0xf]
        %v928 = vld [vmem:[#allocation6 + $0xf4] sm:$0xf]
        %v929 = vld [vmem:[#allocation6 + $0xf8] sm:$0xf]
        %v930 = vld [vmem:[#allocation6 + $0xfc] sm:$0xf]
        %v931 = vld [vmem:[#allocation6 + $0x100] sm:$0xf]
        %v932 = vld [vmem:[#allocation6 + $0x104] sm:$0xf]
        %v933 = vld [vmem:[#allocation6 + $0x108] sm:$0xf]
        %v934 = vld [vmem:[#allocation6 + $0x10c] sm:$0xf]
        %v935 = vld [vmem:[#allocation6 + $0x110] sm:$0xf]
        %v936 = vld [vmem:[#allocation6 + $0x114] sm:$0xf]
        %v937 = vld [vmem:[#allocation6 + $0x118] sm:$0xf]
        %v938 = vld [vmem:[#allocation6 + $0x11c] sm:$0xf]
        %v939 = vld [vmem:[#allocation6 + $0x120] sm:$0xf]
        %v940 = vld [vmem:[#allocation6 + $0x124] sm:$0xf]
        %v941 = vld [vmem:[#allocation6 + $0x128] sm:$0xf]
        %v942 = vld [vmem:[#allocation6 + $0x12c] sm:$0xf]
        %v943 = vld [vmem:[#allocation6 + $0x130] sm:$0xf]
        %v944 = vld [vmem:[#allocation6 + $0x134] sm:$0xf]
        %v945 = vld [vmem:[#allocation6 + $0x138] sm:$0xf]
        %v946 = vld [vmem:[#allocation6 + $0x13c] sm:$0xf]
        %v947 = vld [vmem:[#allocation6 + $0x140] sm:$0xf]
        %v948 = vld [vmem:[#allocation6 + $0x144] sm:$0xf]
        %v949 = vld [vmem:[#allocation6 + $0x148] sm:$0xf]
        %v950 = vld [vmem:[#allocation6 + $0x14c] sm:$0xf]
        %v951 = vld [vmem:[#allocation6 + $0x150] sm:$0xf]
        %v952 = vld [vmem:[#allocation6 + $0x154] sm:$0xf]
        %v953 = vld [vmem:[#allocation6 + $0x158] sm:$0xf]
        %v954 = vld [vmem:[#allocation6 + $0x15c] sm:$0xf]
        %v955 = vld [vmem:[#allocation6 + $0x160] sm:$0xf]
        %v956 = vld [vmem:[#allocation6 + $0x164] sm:$0xf]
        %v957 = vld [vmem:[#allocation6 + $0x168] sm:$0xf]
        %v958 = vld [vmem:[#allocation6 + $0x16c] sm:$0xf]
        %v959 = vld [vmem:[#allocation6 + $0x170] sm:$0xf]
        %v960 = vld [vmem:[#allocation6 + $0x174] sm:$0xf]
        %v961 = vld [vmem:[#allocation6 + $0x178] sm:$0xf]
        %v962 = vld [vmem:[#allocation6 + $0x17c] sm:$0xf]
        %v979 = vunpack.c.l.b16 %v947
        %v980 = vunpack.c.l.b16 %v948
        %v981 = vunpack.c.l.b16 %v949
        %v982 = vunpack.c.l.b16 %v950
        %v983 = vunpack.c.l.b16 %v951
        %v984 = vunpack.c.l.b16 %v952
        %v985 = vunpack.c.l.b16 %v953
        %v986 = vunpack.c.l.b16 %v954
        %v987 = vunpack.c.l.b16 %v955
        %v988 = vunpack.c.l.b16 %v956
        %v989 = vunpack.c.l.b16 %v957
        %v990 = vunpack.c.l.b16 %v958
        %v991 = vunpack.c.l.b16 %v959
        %v992 = vunpack.c.l.b16 %v960
        %v993 = vunpack.c.l.b16 %v961
        %v994 = vunpack.c.l.b16 %v962
        %v995 = vpack.c.b16 %v980, %v979
        %v996 = vpack.c.b16 %v982, %v981
        %v997 = vpack.c.b16 %v984, %v983
        %v998 = vpack.c.b16 %v986, %v985
        %v999 = vpack.c.b16 %v988, %v987
        %v1000 = vpack.c.b16 %v990, %v989
        %v1001 = vpack.c.b16 %v992, %v991
        %v1002 = vpack.c.b16 %v994, %v993
        %1011 = vmatpush.bf16.msra.mxu0 %v1002
        %1012 = vmatpush.bf16.msra.mxu0 %v1001
        %1013 = vmatpush.bf16.msra.mxu0 %v1000
        %1014 = vmatpush.bf16.msra.mxu0 %v999
        %1015 = vmatpush.bf16.msra.mxu0 %v998
        %1016 = vmatpush.bf16.msra.mxu0 %v997
        %1017 = vmatpush.bf16.msra.mxu0 %v996
        %1018 = vmatpush.bf16.msra.mxu0 %v995
        %1019 = vmatmul.bf16.gmra.mxu0 %v914
        %v1020 = vpop.f32.mrf.mxu0
        %v1021 = vadd.f32 0.0, %v1020
        %v1022 = vpop.f32.mrf.mxu0
        %1023 = vdwg.mxu0
        %v1040 = vunpack.c.l.b16 %v931
        %v1041 = vunpack.c.l.b16 %v932
        %v1042 = vunpack.c.l.b16 %v933
        %v1043 = vunpack.c.l.b16 %v934
        %v1044 = vunpack.c.l.b16 %v935
        %v1045 = vunpack.c.l.b16 %v936
        %v1046 = vunpack.c.l.b16 %v937
        %v1047 = vunpack.c.l.b16 %v938
        %v1048 = vunpack.c.l.b16 %v939
        %v1049 = vunpack.c.l.b16 %v940
        %v1050 = vunpack.c.l.b16 %v941
        %v1051 = vunpack.c.l.b16 %v942
        %v1052 = vunpack.c.l.b16 %v943
        %v1053 = vunpack.c.l.b16 %v944
        %v1054 = vunpack.c.l.b16 %v945
        %v1055 = vunpack.c.l.b16 %v946
        %v1056 = vpack.c.b16 %v1041, %v1040
        %v1057 = vpack.c.b16 %v1043, %v1042
        %v1058 = vpack.c.b16 %v1045, %v1044
        %v1059 = vpack.c.b16 %v1047, %v1046
        %v1060 = vpack.c.b16 %v1049, %v1048
        %v1061 = vpack.c.b16 %v1051, %v1050
        %v1062 = vpack.c.b16 %v1053, %v1052
        %v1063 = vpack.c.b16 %v1055, %v1054
        %1072 = vmatpush.bf16.msra.mxu0 %v1063
        %1073 = vmatpush.bf16.msra.mxu0 %v1062
        %1074 = vmatpush.bf16.msra.mxu0 %v1061
        %1075 = vmatpush.bf16.msra.mxu0 %v1060
        %1076 = vmatpush.bf16.msra.mxu0 %v1059
        %1077 = vmatpush.bf16.msra.mxu0 %v1058
        %1078 = vmatpush.bf16.msra.mxu0 %v1057
        %1079 = vmatpush.bf16.msra.mxu0 %v1056
        %1080 = vmatmul.bf16.gmra.mxu0 %v912
        %v1081 = vpop.f32.mrf.mxu0
        %v1082 = vadd.f32 %v1021, %v1081
        %v1083 = vpop.f32.mrf.mxu0
        %1084 = vdwg.mxu0
        %v1101 = vunpack.c.l.b16 %v915
        %v1102 = vunpack.c.l.b16 %v916
        %v1103 = vunpack.c.l.b16 %v917
        %v1104 = vunpack.c.l.b16 %v918
        %v1105 = vunpack.c.l.b16 %v919
        %v1106 = vunpack.c.l.b16 %v920
        %v1107 = vunpack.c.l.b16 %v921
        %v1108 = vunpack.c.l.b16 %v922
        %v1109 = vunpack.c.l.b16 %v923
        %v1110 = vunpack.c.l.b16 %v924
        %v1111 = vunpack.c.l.b16 %v925
        %v1112 = vunpack.c.l.b16 %v926
        %v1113 = vunpack.c.l.b16 %v927
        %v1114 = vunpack.c.l.b16 %v928
        %v1115 = vunpack.c.l.b16 %v929
        %v1116 = vunpack.c.l.b16 %v930
        %v1117 = vpack.c.b16 %v1102, %v1101
        %v1118 = vpack.c.b16 %v1104, %v1103
        %v1119 = vpack.c.b16 %v1106, %v1105
        %v1120 = vpack.c.b16 %v1108, %v1107
        %v1121 = vpack.c.b16 %v1110, %v1109
        %v1122 = vpack.c.b16 %v1112, %v1111
        %v1123 = vpack.c.b16 %v1114, %v1113
        %v1124 = vpack.c.b16 %v1116, %v1115
        %1133 = vmatpush.bf16.msra.mxu0 %v1124
        %1134 = vmatpush.bf16.msra.mxu0 %v1123
        %1135 = vmatpush.bf16.msra.mxu0 %v1122
        %1136 = vmatpush.bf16.msra.mxu0 %v1121
        %1137 = vmatpush.bf16.msra.mxu0 %v1120
        %1138 = vmatpush.bf16.msra.mxu0 %v1119
        %1139 = vmatpush.bf16.msra.mxu0 %v1118
        %1140 = vmatpush.bf16.msra.mxu0 %v1117
        %1141 = vmatmul.bf16.gmra.mxu0 %v910
        %v1142 = vpop.f32.mrf.mxu0
        %v1143 = vadd.f32 0.0, %v1142
        %v1144 = vpop.f32.mrf.mxu0
        %1145 = vdwg.mxu0
        %v1146 = vadd.f32 %v1082, %v1143
        %v1147 = vperm.slane %v906, 0
        %v1148 = vadd.f32 %v1146, %v1147
        %vm1149 = vcmp.ge.f32.partialorder %v1148, 0.0
        %v1150 = vmul.f32 %v1148, 0.2
        %v1151 = vsel %vm1149, %v1148, %v1150
        %v1152 = vperm.slane %v907, 0
        %v1153 = vmul.f32 %v1151, %v1152
        %v1154 = vperm.slane %v908, 0
        %v1155 = vadd.f32 %v1153, %v1154
        %1156 = vst [vmem:[%s562] sm:$0x3] %v1155
        %1157 = vst [vmem:[#allocation2 + $0x1] sm:$0x3] %v1155
        %v1158 = vld [vmem:[#allocation8 + $0x95] sm:$0x1]
        %v1159 = vld [vmem:[#allocation8 + $0x96] sm:$0x1]
        %v1160 = vld [vmem:[#allocation8 + $0x97] sm:$0x1]
        %v1161 = vld [vmem:[#allocation2] ss:$2 sm:$0x1]
        %v1162 = vpack.c.bf16 %v1161, %v1161
        %v1163 = vld [vmem:[%s661] ss:$2 sm:$0x1]
        %v1164 = vpack.c.bf16 %v1163, %v1163
        %v1165 = vld [vmem:[%s664] ss:$2 sm:$0x1]
        %v1166 = vpack.c.bf16 %v1165, %v1165
        %v1167 = vld [vmem:[#allocation6 + $0x180] sm:$0xf]
        %v1168 = vld [vmem:[#allocation6 + $0x184] sm:$0xf]
        %v1169 = vld [vmem:[#allocation6 + $0x188] sm:$0xf]
        %v1170 = vld [vmem:[#allocation6 + $0x18c] sm:$0xf]
        %v1171 = vld [vmem:[#allocation6 + $0x190] sm:$0xf]
        %v1172 = vld [vmem:[#allocation6 + $0x194] sm:$0xf]
        %v1173 = vld [vmem:[#allocation6 + $0x198] sm:$0xf]
        %v1174 = vld [vmem:[#allocation6 + $0x19c] sm:$0xf]
        %v1175 = vld [vmem:[#allocation6 + $0x1a0] sm:$0xf]
        %v1176 = vld [vmem:[#allocation6 + $0x1a4] sm:$0xf]
        %v1177 = vld [vmem:[#allocation6 + $0x1a8] sm:$0xf]
        %v1178 = vld [vmem:[#allocation6 + $0x1ac] sm:$0xf]
        %v1179 = vld [vmem:[#allocation6 + $0x1b0] sm:$0xf]
        %v1180 = vld [vmem:[#allocation6 + $0x1b4] sm:$0xf]
        %v1181 = vld [vmem:[#allocation6 + $0x1b8] sm:$0xf]
        %v1182 = vld [vmem:[#allocation6 + $0x1bc] sm:$0xf]
        %v1183 = vld [vmem:[#allocation6 + $0x1c0] sm:$0xf]
        %v1184 = vld [vmem:[#allocation6 + $0x1c4] sm:$0xf]
        %v1185 = vld [vmem:[#allocation6 + $0x1c8] sm:$0xf]
        %v1186 = vld [vmem:[#allocation6 + $0x1cc] sm:$0xf]
        %v1187 = vld [vmem:[#allocation6 + $0x1d0] sm:$0xf]
        %v1188 = vld [vmem:[#allocation6 + $0x1d4] sm:$0xf]
        %v1189 = vld [vmem:[#allocation6 + $0x1d8] sm:$0xf]
        %v1190 = vld [vmem:[#allocation6 + $0x1dc] sm:$0xf]
        %v1191 = vld [vmem:[#allocation6 + $0x1e0] sm:$0xf]
        %v1192 = vld [vmem:[#allocation6 + $0x1e4] sm:$0xf]
        %v1193 = vld [vmem:[#allocation6 + $0x1e8] sm:$0xf]
        %v1194 = vld [vmem:[#allocation6 + $0x1ec] sm:$0xf]
        %v1195 = vld [vmem:[#allocation6 + $0x1f0] sm:$0xf]
        %v1196 = vld [vmem:[#allocation6 + $0x1f4] sm:$0xf]
        %v1197 = vld [vmem:[#allocation6 + $0x1f8] sm:$0xf]
        %v1198 = vld [vmem:[#allocation6 + $0x1fc] sm:$0xf]
        %v1199 = vld [vmem:[#allocation6 + $0x200] sm:$0xf]
        %v1200 = vld [vmem:[#allocation6 + $0x204] sm:$0xf]
        %v1201 = vld [vmem:[#allocation6 + $0x208] sm:$0xf]
        %v1202 = vld [vmem:[#allocation6 + $0x20c] sm:$0xf]
        %v1203 = vld [vmem:[#allocation6 + $0x210] sm:$0xf]
        %v1204 = vld [vmem:[#allocation6 + $0x214] sm:$0xf]
        %v1205 = vld [vmem:[#allocation6 + $0x218] sm:$0xf]
        %v1206 = vld [vmem:[#allocation6 + $0x21c] sm:$0xf]
        %v1207 = vld [vmem:[#allocation6 + $0x220] sm:$0xf]
        %v1208 = vld [vmem:[#allocation6 + $0x224] sm:$0xf]
        %v1209 = vld [vmem:[#allocation6 + $0x228] sm:$0xf]
        %v1210 = vld [vmem:[#allocation6 + $0x22c] sm:$0xf]
        %v1211 = vld [vmem:[#allocation6 + $0x230] sm:$0xf]
        %v1212 = vld [vmem:[#allocation6 + $0x234] sm:$0xf]
        %v1213 = vld [vmem:[#allocation6 + $0x238] sm:$0xf]
        %v1214 = vld [vmem:[#allocation6 + $0x23c] sm:$0xf]
        %v1231 = vunpack.c.l.b16 %v1199
        %v1232 = vunpack.c.l.b16 %v1200
        %v1233 = vunpack.c.l.b16 %v1201
        %v1234 = vunpack.c.l.b16 %v1202
        %v1235 = vunpack.c.l.b16 %v1203
        %v1236 = vunpack.c.l.b16 %v1204
        %v1237 = vunpack.c.l.b16 %v1205
        %v1238 = vunpack.c.l.b16 %v1206
        %v1239 = vunpack.c.l.b16 %v1207
        %v1240 = vunpack.c.l.b16 %v1208
        %v1241 = vunpack.c.l.b16 %v1209
        %v1242 = vunpack.c.l.b16 %v1210
        %v1243 = vunpack.c.l.b16 %v1211
        %v1244 = vunpack.c.l.b16 %v1212
        %v1245 = vunpack.c.l.b16 %v1213
        %v1246 = vunpack.c.l.b16 %v1214
        %v1247 = vpack.c.b16 %v1232, %v1231
        %v1248 = vpack.c.b16 %v1234, %v1233
        %v1249 = vpack.c.b16 %v1236, %v1235
        %v1250 = vpack.c.b16 %v1238, %v1237
        %v1251 = vpack.c.b16 %v1240, %v1239
        %v1252 = vpack.c.b16 %v1242, %v1241
        %v1253 = vpack.c.b16 %v1244, %v1243
        %v1254 = vpack.c.b16 %v1246, %v1245
        %1263 = vmatpush.bf16.msra.mxu0 %v1254
        %1264 = vmatpush.bf16.msra.mxu0 %v1253
        %1265 = vmatpush.bf16.msra.mxu0 %v1252
        %1266 = vmatpush.bf16.msra.mxu0 %v1251
        %1267 = vmatpush.bf16.msra.mxu0 %v1250
        %1268 = vmatpush.bf16.msra.mxu0 %v1249
        %1269 = vmatpush.bf16.msra.mxu0 %v1248
        %1270 = vmatpush.bf16.msra.mxu0 %v1247
        %1271 = vmatmul.bf16.gmra.mxu0 %v1166
        %v1272 = vpop.f32.mrf.mxu0
        %v1273 = vadd.f32 0.0, %v1272
        %v1274 = vpop.f32.mrf.mxu0
        %1275 = vdwg.mxu0
        %v1292 = vunpack.c.l.b16 %v1183
        %v1293 = vunpack.c.l.b16 %v1184
        %v1294 = vunpack.c.l.b16 %v1185
        %v1295 = vunpack.c.l.b16 %v1186
        %v1296 = vunpack.c.l.b16 %v1187
        %v1297 = vunpack.c.l.b16 %v1188
        %v1298 = vunpack.c.l.b16 %v1189
        %v1299 = vunpack.c.l.b16 %v1190
        %v1300 = vunpack.c.l.b16 %v1191
        %v1301 = vunpack.c.l.b16 %v1192
        %v1302 = vunpack.c.l.b16 %v1193
        %v1303 = vunpack.c.l.b16 %v1194
        %v1304 = vunpack.c.l.b16 %v1195
        %v1305 = vunpack.c.l.b16 %v1196
        %v1306 = vunpack.c.l.b16 %v1197
        %v1307 = vunpack.c.l.b16 %v1198
        %v1308 = vpack.c.b16 %v1293, %v1292
        %v1309 = vpack.c.b16 %v1295, %v1294
        %v1310 = vpack.c.b16 %v1297, %v1296
        %v1311 = vpack.c.b16 %v1299, %v1298
        %v1312 = vpack.c.b16 %v1301, %v1300
        %v1313 = vpack.c.b16 %v1303, %v1302
        %v1314 = vpack.c.b16 %v1305, %v1304
        %v1315 = vpack.c.b16 %v1307, %v1306
        %1324 = vmatpush.bf16.msra.mxu0 %v1315
        %1325 = vmatpush.bf16.msra.mxu0 %v1314
        %1326 = vmatpush.bf16.msra.mxu0 %v1313
        %1327 = vmatpush.bf16.msra.mxu0 %v1312
        %1328 = vmatpush.bf16.msra.mxu0 %v1311
        %1329 = vmatpush.bf16.msra.mxu0 %v1310
        %1330 = vmatpush.bf16.msra.mxu0 %v1309
        %1331 = vmatpush.bf16.msra.mxu0 %v1308
        %1332 = vmatmul.bf16.gmra.mxu0 %v1164
        %v1333 = vpop.f32.mrf.mxu0
        %v1334 = vadd.f32 %v1273, %v1333
        %v1335 = vpop.f32.mrf.mxu0
        %1336 = vdwg.mxu0
        %v1353 = vunpack.c.l.b16 %v1167
        %v1354 = vunpack.c.l.b16 %v1168
        %v1355 = vunpack.c.l.b16 %v1169
        %v1356 = vunpack.c.l.b16 %v1170
        %v1357 = vunpack.c.l.b16 %v1171
        %v1358 = vunpack.c.l.b16 %v1172
        %v1359 = vunpack.c.l.b16 %v1173
        %v1360 = vunpack.c.l.b16 %v1174
        %v1361 = vunpack.c.l.b16 %v1175
        %v1362 = vunpack.c.l.b16 %v1176
        %v1363 = vunpack.c.l.b16 %v1177
        %v1364 = vunpack.c.l.b16 %v1178
        %v1365 = vunpack.c.l.b16 %v1179
        %v1366 = vunpack.c.l.b16 %v1180
        %v1367 = vunpack.c.l.b16 %v1181
        %v1368 = vunpack.c.l.b16 %v1182
        %v1369 = vpack.c.b16 %v1354, %v1353
        %v1370 = vpack.c.b16 %v1356, %v1355
        %v1371 = vpack.c.b16 %v1358, %v1357
        %v1372 = vpack.c.b16 %v1360, %v1359
        %v1373 = vpack.c.b16 %v1362, %v1361
        %v1374 = vpack.c.b16 %v1364, %v1363
        %v1375 = vpack.c.b16 %v1366, %v1365
        %v1376 = vpack.c.b16 %v1368, %v1367
        %1385 = vmatpush.bf16.msra.mxu0 %v1376
        %1386 = vmatpush.bf16.msra.mxu0 %v1375
        %1387 = vmatpush.bf16.msra.mxu0 %v1374
        %1388 = vmatpush.bf16.msra.mxu0 %v1373
        %1389 = vmatpush.bf16.msra.mxu0 %v1372
        %1390 = vmatpush.bf16.msra.mxu0 %v1371
        %1391 = vmatpush.bf16.msra.mxu0 %v1370
        %1392 = vmatpush.bf16.msra.mxu0 %v1369
        %1393 = vmatmul.bf16.gmra.mxu0 %v1162
        %v1394 = vpop.f32.mrf.mxu0
        %v1395 = vadd.f32 0.0, %v1394
        %v1396 = vpop.f32.mrf.mxu0
        %1397 = vdwg.mxu0
        %v1398 = vadd.f32 %v1334, %v1395
        %v1399 = vadd.f32 %v1398, %v1158
        %vm1400 = vcmp.ge.f32.partialorder %v1399, 0.0
        %v1401 = vmul.f32 %v1399, 0.2
        %v1402 = vsel %vm1400, %v1399, %v1401
        %v1403 = vmul.f32 %v1402, %v1159
        %v1404 = vadd.f32 %v1403, %v1160
        %1405 = vst [vmem:[%s568] sm:$0x1] %v1404
        %v1406 = vld [vmem:[#allocation8 + $0x98] sm:$0x1]
        %v1407 = vmul.f32 %v1404, %v1406
        %v1408 = vadd.f32 %v1407, 0.0
        %v1409 = vld [vmem:[#allocation8 + $0x99] sm:$0x1]
        %v1410 = vadd.f32 %v1408, %v1409
        %vm1411 = vcmask 1040384
        %v1412 = vsel %vm1411, %v1410, 0.0
        %1413 = vadd.xlane.f32.xlu0 %v1412
        %v1414 = vpop.xlane.xlu0 %1413
        %v1415 = vld [vmem:[#allocation12] sm:$0xff]
        %v1416 = vld [vmem:[#allocation12 + $0x8] sm:$0xff]
        %v1417 = vld [vmem:[#allocation12 + $0x10] sm:$0xff]
        %v1418 = vld [vmem:[#allocation12 + $0x18] sm:$0xff]
        %v1419 = vld [vmem:[#allocation12 + $0x20] sm:$0xff]
        %v1420 = vld [vmem:[#allocation12 + $0x28] sm:$0xff]
        %v1421 = vld [vmem:[#allocation12 + $0x30] sm:$0xff]
        %v1422 = vld [vmem:[#allocation12 + $0x38] sm:$0xff]
        %v1423 = vld [vmem:[#allocation12 + $0x40] sm:$0xff]
        %v1424 = vld [vmem:[#allocation12 + $0x48] sm:$0xff]
        %v1425 = vld [vmem:[#allocation12 + $0x50] sm:$0xff]
        %v1426 = vld [vmem:[#allocation12 + $0x58] sm:$0xff]
        %v1427 = vld [vmem:[#allocation12 + $0x60] sm:$0xff]
        %v1428 = vld [vmem:[#allocation12 + $0x68] sm:$0xff]
        %v1429 = vld [vmem:[#allocation12 + $0x70] sm:$0xff]
        %v1430 = vld [vmem:[#allocation12 + $0x78] sm:$0xff]
        %v1431 = vld [vmem:[#allocation12 + $0x80] sm:$0xff]
        %v1432 = vld [vmem:[#allocation12 + $0x88] sm:$0xff]
        %v1433 = vld [vmem:[%s505] sm:$0xff]
        %v1434 = vld [vmem:[%s505 + $0x8] sm:$0xff]
        %v1435 = vld [vmem:[%s505 + $0x10] sm:$0xff]
        %v1436 = vld [vmem:[%s505 + $0x18] sm:$0xff]
        %v1437 = vld [vmem:[#allocation12 + $0x90] sm:$0x1]
        %v1438 = vperm.slane %v1437, 0
        %v1440 = vsel %vm613, %v1434, 0
        %v1443 = vsel %vm613, %v1436, 0
        %1445 = vmatpush.msra.mxu0 %v1430
        %1446 = vmatpush.msra.mxu0 %v1429
        %1447 = vmatpush.msra.mxu0 %v1428
        %1448 = vmatpush.msra.mxu0 %v1427
        %1449 = vmatpush.msra.mxu0 %v1426
        %1450 = vmatpush.msra.mxu0 %v1425
        %1451 = vmatpush.msra.mxu0 %v1424
        %1452 = vmatpush.msra.mxu0 %v1423
        %1453 = vmatpush.msra.mxu0 %v1422
        %1454 = vmatpush.msra.mxu0 %v1421
        %1455 = vmatpush.msra.mxu0 %v1420
        %1456 = vmatpush.msra.mxu0 %v1419
        %1457 = vmatpush.msra.mxu0 %v1418
        %1458 = vmatpush.msra.mxu0 %v1417
        %1459 = vmatpush.msra.mxu0 %v1416
        %1460 = vmatpush.msra.mxu0 %v1415
        %1461 = vmatmul.f32.gmra.mxu0 %v1433
        %v1462 = vpop.f32.mrf.mxu0
        %v1463 = vadd.f32 %v1438, %v1462
        %1464 = vmatmul.f32.gmra.mxu0 %v1435
        %v1465 = vpop.f32.mrf.mxu0
        %v1466 = vadd.f32 %v1438, %v1465
        %1467 = vdwg.mxu0
        %1468 = vmatpush.msra.mxu0 0.0
        %1469 = vmatpush.msra.mxu0 0.0
        %1470 = vmatpush.msra.mxu0 0.0
        %1471 = vmatpush.msra.mxu0 0.0
        %1472 = vmatpush.msra.mxu0 0.0
        %1473 = vmatpush.msra.mxu0 0.0
        %1474 = vmatpush.msra.mxu0 0.0
        %1475 = vmatpush.msra.mxu0 0.0
        %1476 = vmatpush.msra.mxu0 0.0
        %1477 = vmatpush.msra.mxu0 0.0
        %1478 = vmatpush.msra.mxu0 0.0
        %1479 = vmatpush.msra.mxu0 0.0
        %1480 = vmatpush.msra.mxu0 0.0
        %1481 = vmatpush.msra.mxu0 0.0
        %1482 = vmatpush.msra.mxu0 %v1432
        %1483 = vmatpush.msra.mxu0 %v1431
        %1484 = vmatmul.f32.gmra.mxu0 %v1440
        %v1485 = vpop.f32.mrf.mxu0
        %v1486 = vadd.f32 %v1463, %v1485
        %1487 = vmatmul.f32.gmra.mxu0 %v1443
        %v1488 = vpop.f32.mrf.mxu0
        %v1489 = vadd.f32 %v1466, %v1488
        %1490 = vdwg.mxu0
        %1491 = vst [vmem:[#allocation2 + $0x1] sm:$0xff] %v1486
        %1492 = vst [vmem:[#allocation2 + $0x9] sm:$0xff] %v1489
        %v1493 = vld [vmem:[#allocation12 + $0x91] sm:$0x1]
        %v1494 = vld [vmem:[#allocation2] ss:$2 sm:$0xff]
        %v1495 = vpack.c.bf16 %v1494, %v1494
        %v1496 = vld [vmem:[%s661] ss:$2 sm:$0xff]
        %v1497 = vpack.c.bf16 %v1496, %v1496
        %v1498 = vld [vmem:[%s664] ss:$2 sm:$0xff]
        %v1499 = vpack.c.bf16 %v1498, %v1498
        %v1500 = vld [vmem:[#allocation11] sm:$0xf]
        %v1501 = vld [vmem:[#allocation11 + $0x4] sm:$0xf]
        %v1502 = vld [vmem:[#allocation11 + $0x8] sm:$0xf]
        %v1503 = vld [vmem:[#allocation11 + $0xc] sm:$0xf]
        %v1504 = vld [vmem:[#allocation11 + $0x10] sm:$0xf]
        %v1505 = vld [vmem:[#allocation11 + $0x14] sm:$0xf]
        %v1506 = vld [vmem:[#allocation11 + $0x18] sm:$0xf]
        %v1507 = vld [vmem:[#allocation11 + $0x1c] sm:$0xf]
        %v1508 = vld [vmem:[#allocation11 + $0x20] sm:$0xf]
        %v1509 = vld [vmem:[#allocation11 + $0x24] sm:$0xf]
        %v1510 = vld [vmem:[#allocation11 + $0x28] sm:$0xf]
        %v1511 = vld [vmem:[#allocation11 + $0x2c] sm:$0xf]
        %v1512 = vld [vmem:[#allocation11 + $0x30] sm:$0xf]
        %v1513 = vld [vmem:[#allocation11 + $0x34] sm:$0xf]
        %v1514 = vld [vmem:[#allocation11 + $0x38] sm:$0xf]
        %v1515 = vld [vmem:[#allocation11 + $0x3c] sm:$0xf]
        %v1516 = vld [vmem:[#allocation11 + $0x40] sm:$0xf]
        %v1517 = vld [vmem:[#allocation11 + $0x44] sm:$0xf]
        %v1518 = vld [vmem:[#allocation11 + $0x48] sm:$0xf]
        %v1519 = vld [vmem:[#allocation11 + $0x4c] sm:$0xf]
        %v1520 = vld [vmem:[#allocation11 + $0x50] sm:$0xf]
        %v1521 = vld [vmem:[#allocation11 + $0x54] sm:$0xf]
        %v1522 = vld [vmem:[#allocation11 + $0x58] sm:$0xf]
        %v1523 = vld [vmem:[#allocation11 + $0x5c] sm:$0xf]
        %v1524 = vld [vmem:[#allocation11 + $0x60] sm:$0xf]
        %v1525 = vld [vmem:[#allocation11 + $0x64] sm:$0xf]
        %v1526 = vld [vmem:[#allocation11 + $0x68] sm:$0xf]
        %v1527 = vld [vmem:[#allocation11 + $0x6c] sm:$0xf]
        %v1528 = vld [vmem:[#allocation11 + $0x70] sm:$0xf]
        %v1529 = vld [vmem:[#allocation11 + $0x74] sm:$0xf]
        %v1530 = vld [vmem:[#allocation11 + $0x78] sm:$0xf]
        %v1531 = vld [vmem:[#allocation11 + $0x7c] sm:$0xf]
        %v1532 = vld [vmem:[#allocation11 + $0x80] sm:$0xf]
        %v1533 = vld [vmem:[#allocation11 + $0x84] sm:$0xf]
        %v1534 = vld [vmem:[#allocation11 + $0x88] sm:$0xf]
        %v1535 = vld [vmem:[#allocation11 + $0x8c] sm:$0xf]
        %v1536 = vld [vmem:[#allocation11 + $0x90] sm:$0xf]
        %v1537 = vld [vmem:[#allocation11 + $0x94] sm:$0xf]
        %v1538 = vld [vmem:[#allocation11 + $0x98] sm:$0xf]
        %v1539 = vld [vmem:[#allocation11 + $0x9c] sm:$0xf]
        %v1540 = vld [vmem:[#allocation11 + $0xa0] sm:$0xf]
        %v1541 = vld [vmem:[#allocation11 + $0xa4] sm:$0xf]
        %v1542 = vld [vmem:[#allocation11 + $0xa8] sm:$0xf]
        %v1543 = vld [vmem:[#allocation11 + $0xac] sm:$0xf]
        %v1544 = vld [vmem:[#allocation11 + $0xb0] sm:$0xf]
        %v1545 = vld [vmem:[#allocation11 + $0xb4] sm:$0xf]
        %v1546 = vld [vmem:[#allocation11 + $0xb8] sm:$0xf]
        %v1547 = vld [vmem:[#allocation11 + $0xbc] sm:$0xf]
        %v1564 = vunpack.c.l.b16 %v1532
        %v1565 = vunpack.c.l.b16 %v1533
        %v1566 = vunpack.c.l.b16 %v1534
        %v1567 = vunpack.c.l.b16 %v1535
        %v1568 = vunpack.c.l.b16 %v1536
        %v1569 = vunpack.c.l.b16 %v1537
        %v1570 = vunpack.c.l.b16 %v1538
        %v1571 = vunpack.c.l.b16 %v1539
        %v1572 = vunpack.c.l.b16 %v1540
        %v1573 = vunpack.c.l.b16 %v1541
        %v1574 = vunpack.c.l.b16 %v1542
        %v1575 = vunpack.c.l.b16 %v1543
        %v1576 = vunpack.c.l.b16 %v1544
        %v1577 = vunpack.c.l.b16 %v1545
        %v1578 = vunpack.c.l.b16 %v1546
        %v1579 = vunpack.c.l.b16 %v1547
        %v1580 = vpack.c.b16 %v1565, %v1564
        %v1581 = vpack.c.b16 %v1567, %v1566
        %v1582 = vpack.c.b16 %v1569, %v1568
        %v1583 = vpack.c.b16 %v1571, %v1570
        %v1584 = vpack.c.b16 %v1573, %v1572
        %v1585 = vpack.c.b16 %v1575, %v1574
        %v1586 = vpack.c.b16 %v1577, %v1576
        %v1587 = vpack.c.b16 %v1579, %v1578
        %1596 = vmatpush.bf16.msra.mxu0 %v1587
        %1597 = vmatpush.bf16.msra.mxu0 %v1586
        %1598 = vmatpush.bf16.msra.mxu0 %v1585
        %1599 = vmatpush.bf16.msra.mxu0 %v1584
        %1600 = vmatpush.bf16.msra.mxu0 %v1583
        %1601 = vmatpush.bf16.msra.mxu0 %v1582
        %1602 = vmatpush.bf16.msra.mxu0 %v1581
        %1603 = vmatpush.bf16.msra.mxu0 %v1580
        %1604 = vmatmul.bf16.gmra.mxu0 %v1499
        %v1605 = vpop.f32.mrf.mxu0
        %v1606 = vadd.f32 0.0, %v1605
        %v1607 = vpop.f32.mrf.mxu0
        %1608 = vdwg.mxu0
        %v1625 = vunpack.c.l.b16 %v1516
        %v1626 = vunpack.c.l.b16 %v1517
        %v1627 = vunpack.c.l.b16 %v1518
        %v1628 = vunpack.c.l.b16 %v1519
        %v1629 = vunpack.c.l.b16 %v1520
        %v1630 = vunpack.c.l.b16 %v1521
        %v1631 = vunpack.c.l.b16 %v1522
        %v1632 = vunpack.c.l.b16 %v1523
        %v1633 = vunpack.c.l.b16 %v1524
        %v1634 = vunpack.c.l.b16 %v1525
        %v1635 = vunpack.c.l.b16 %v1526
        %v1636 = vunpack.c.l.b16 %v1527
        %v1637 = vunpack.c.l.b16 %v1528
        %v1638 = vunpack.c.l.b16 %v1529
        %v1639 = vunpack.c.l.b16 %v1530
        %v1640 = vunpack.c.l.b16 %v1531
        %v1641 = vpack.c.b16 %v1626, %v1625
        %v1642 = vpack.c.b16 %v1628, %v1627
        %v1643 = vpack.c.b16 %v1630, %v1629
        %v1644 = vpack.c.b16 %v1632, %v1631
        %v1645 = vpack.c.b16 %v1634, %v1633
        %v1646 = vpack.c.b16 %v1636, %v1635
        %v1647 = vpack.c.b16 %v1638, %v1637
        %v1648 = vpack.c.b16 %v1640, %v1639
        %1657 = vmatpush.bf16.msra.mxu0 %v1648
        %1658 = vmatpush.bf16.msra.mxu0 %v1647
        %1659 = vmatpush.bf16.msra.mxu0 %v1646
        %1660 = vmatpush.bf16.msra.mxu0 %v1645
        %1661 = vmatpush.bf16.msra.mxu0 %v1644
        %1662 = vmatpush.bf16.msra.mxu0 %v1643
        %1663 = vmatpush.bf16.msra.mxu0 %v1642
        %1664 = vmatpush.bf16.msra.mxu0 %v1641
        %1665 = vmatmul.bf16.gmra.mxu0 %v1497
        %v1666 = vpop.f32.mrf.mxu0
        %v1667 = vadd.f32 %v1606, %v1666
        %v1668 = vpop.f32.mrf.mxu0
        %1669 = vdwg.mxu0
        %v1686 = vunpack.c.l.b16 %v1500
        %v1687 = vunpack.c.l.b16 %v1501
        %v1688 = vunpack.c.l.b16 %v1502
        %v1689 = vunpack.c.l.b16 %v1503
        %v1690 = vunpack.c.l.b16 %v1504
        %v1691 = vunpack.c.l.b16 %v1505
        %v1692 = vunpack.c.l.b16 %v1506
        %v1693 = vunpack.c.l.b16 %v1507
        %v1694 = vunpack.c.l.b16 %v1508
        %v1695 = vunpack.c.l.b16 %v1509
        %v1696 = vunpack.c.l.b16 %v1510
        %v1697 = vunpack.c.l.b16 %v1511
        %v1698 = vunpack.c.l.b16 %v1512
        %v1699 = vunpack.c.l.b16 %v1513
        %v1700 = vunpack.c.l.b16 %v1514
        %v1701 = vunpack.c.l.b16 %v1515
        %v1702 = vpack.c.b16 %v1687, %v1686
        %v1703 = vpack.c.b16 %v1689, %v1688
        %v1704 = vpack.c.b16 %v1691, %v1690
        %v1705 = vpack.c.b16 %v1693, %v1692
        %v1706 = vpack.c.b16 %v1695, %v1694
        %v1707 = vpack.c.b16 %v1697, %v1696
        %v1708 = vpack.c.b16 %v1699, %v1698
        %v1709 = vpack.c.b16 %v1701, %v1700
        %1718 = vmatpush.bf16.msra.mxu0 %v1709
        %1719 = vmatpush.bf16.msra.mxu0 %v1708
        %1720 = vmatpush.bf16.msra.mxu0 %v1707
        %1721 = vmatpush.bf16.msra.mxu0 %v1706
        %1722 = vmatpush.bf16.msra.mxu0 %v1705
        %1723 = vmatpush.bf16.msra.mxu0 %v1704
        %1724 = vmatpush.bf16.msra.mxu0 %v1703
        %1725 = vmatpush.bf16.msra.mxu0 %v1702
        %1726 = vmatmul.bf16.gmra.mxu0 %v1495
        %v1727 = vpop.f32.mrf.mxu0
        %v1728 = vadd.f32 0.0, %v1727
        %v1729 = vpop.f32.mrf.mxu0
        %1730 = vdwg.mxu0
        %v1731 = vadd.f32 %v1667, %v1728
        %v1732 = vperm.slane %v1493, 0
        %v1733 = vadd.f32 %v1731, %v1732
        %vm1734 = vcmp.ge.f32.partialorder %v1733, 0.0
        %v1735 = vmul.f32 %v1733, 0.2
        %v1736 = vsel %vm1734, %v1733, %v1735
        %1737 = vst [vmem:[%s575] sm:$0xff] %v1736
        %1738 = vst [vmem:[#allocation2 + $0x1] sm:$0xff] %v1736
        %v1739 = vld [vmem:[#allocation12 + $0x92] sm:$0x1]
        %v1740 = vld [vmem:[#allocation12 + $0x93] sm:$0x1]
        %v1741 = vld [vmem:[#allocation12 + $0x94] sm:$0x1]
        %v1742 = vld [vmem:[#allocation2] ss:$2 sm:$0xf]
        %v1743 = vpack.c.bf16 %v1742, %v1742
        %v1744 = vld [vmem:[%s661] ss:$2 sm:$0xf]
        %v1745 = vpack.c.bf16 %v1744, %v1744
        %v1746 = vld [vmem:[%s664] ss:$2 sm:$0xf]
        %v1747 = vpack.c.bf16 %v1746, %v1746
        %v1748 = vld [vmem:[#allocation11 + $0xc0] sm:$0xf]
        %v1749 = vld [vmem:[#allocation11 + $0xc4] sm:$0xf]
        %v1750 = vld [vmem:[#allocation11 + $0xc8] sm:$0xf]
        %v1751 = vld [vmem:[#allocation11 + $0xcc] sm:$0xf]
        %v1752 = vld [vmem:[#allocation11 + $0xd0] sm:$0xf]
        %v1753 = vld [vmem:[#allocation11 + $0xd4] sm:$0xf]
        %v1754 = vld [vmem:[#allocation11 + $0xd8] sm:$0xf]
        %v1755 = vld [vmem:[#allocation11 + $0xdc] sm:$0xf]
        %v1756 = vld [vmem:[#allocation11 + $0xe0] sm:$0xf]
        %v1757 = vld [vmem:[#allocation11 + $0xe4] sm:$0xf]
        %v1758 = vld [vmem:[#allocation11 + $0xe8] sm:$0xf]
        %v1759 = vld [vmem:[#allocation11 + $0xec] sm:$0xf]
        %v1760 = vld [vmem:[#allocation11 + $0xf0] sm:$0xf]
        %v1761 = vld [vmem:[#allocation11 + $0xf4] sm:$0xf]
        %v1762 = vld [vmem:[#allocation11 + $0xf8] sm:$0xf]
        %v1763 = vld [vmem:[#allocation11 + $0xfc] sm:$0xf]
        %v1764 = vld [vmem:[#allocation11 + $0x100] sm:$0xf]
        %v1765 = vld [vmem:[#allocation11 + $0x104] sm:$0xf]
        %v1766 = vld [vmem:[#allocation11 + $0x108] sm:$0xf]
        %v1767 = vld [vmem:[#allocation11 + $0x10c] sm:$0xf]
        %v1768 = vld [vmem:[#allocation11 + $0x110] sm:$0xf]
        %v1769 = vld [vmem:[#allocation11 + $0x114] sm:$0xf]
        %v1770 = vld [vmem:[#allocation11 + $0x118] sm:$0xf]
        %v1771 = vld [vmem:[#allocation11 + $0x11c] sm:$0xf]
        %v1772 = vld [vmem:[#allocation11 + $0x120] sm:$0xf]
        %v1773 = vld [vmem:[#allocation11 + $0x124] sm:$0xf]
        %v1774 = vld [vmem:[#allocation11 + $0x128] sm:$0xf]
        %v1775 = vld [vmem:[#allocation11 + $0x12c] sm:$0xf]
        %v1776 = vld [vmem:[#allocation11 + $0x130] sm:$0xf]
        %v1777 = vld [vmem:[#allocation11 + $0x134] sm:$0xf]
        %v1778 = vld [vmem:[#allocation11 + $0x138] sm:$0xf]
        %v1779 = vld [vmem:[#allocation11 + $0x13c] sm:$0xf]
        %v1780 = vld [vmem:[#allocation11 + $0x140] sm:$0xf]
        %v1781 = vld [vmem:[#allocation11 + $0x144] sm:$0xf]
        %v1782 = vld [vmem:[#allocation11 + $0x148] sm:$0xf]
        %v1783 = vld [vmem:[#allocation11 + $0x14c] sm:$0xf]
        %v1784 = vld [vmem:[#allocation11 + $0x150] sm:$0xf]
        %v1785 = vld [vmem:[#allocation11 + $0x154] sm:$0xf]
        %v1786 = vld [vmem:[#allocation11 + $0x158] sm:$0xf]
        %v1787 = vld [vmem:[#allocation11 + $0x15c] sm:$0xf]
        %v1788 = vld [vmem:[#allocation11 + $0x160] sm:$0xf]
        %v1789 = vld [vmem:[#allocation11 + $0x164] sm:$0xf]
        %v1790 = vld [vmem:[#allocation11 + $0x168] sm:$0xf]
        %v1791 = vld [vmem:[#allocation11 + $0x16c] sm:$0xf]
        %v1792 = vld [vmem:[#allocation11 + $0x170] sm:$0xf]
        %v1793 = vld [vmem:[#allocation11 + $0x174] sm:$0xf]
        %v1794 = vld [vmem:[#allocation11 + $0x178] sm:$0xf]
        %v1795 = vld [vmem:[#allocation11 + $0x17c] sm:$0xf]
        %v1812 = vunpack.c.l.b16 %v1780
        %v1813 = vunpack.c.l.b16 %v1781
        %v1814 = vunpack.c.l.b16 %v1782
        %v1815 = vunpack.c.l.b16 %v1783
        %v1816 = vunpack.c.l.b16 %v1784
        %v1817 = vunpack.c.l.b16 %v1785
        %v1818 = vunpack.c.l.b16 %v1786
        %v1819 = vunpack.c.l.b16 %v1787
        %v1820 = vunpack.c.l.b16 %v1788
        %v1821 = vunpack.c.l.b16 %v1789
        %v1822 = vunpack.c.l.b16 %v1790
        %v1823 = vunpack.c.l.b16 %v1791
        %v1824 = vunpack.c.l.b16 %v1792
        %v1825 = vunpack.c.l.b16 %v1793
        %v1826 = vunpack.c.l.b16 %v1794
        %v1827 = vunpack.c.l.b16 %v1795
        %v1828 = vpack.c.b16 %v1813, %v1812
        %v1829 = vpack.c.b16 %v1815, %v1814
        %v1830 = vpack.c.b16 %v1817, %v1816
        %v1831 = vpack.c.b16 %v1819, %v1818
        %v1832 = vpack.c.b16 %v1821, %v1820
        %v1833 = vpack.c.b16 %v1823, %v1822
        %v1834 = vpack.c.b16 %v1825, %v1824
        %v1835 = vpack.c.b16 %v1827, %v1826
        %1844 = vmatpush.bf16.msra.mxu0 %v1835
        %1845 = vmatpush.bf16.msra.mxu0 %v1834
        %1846 = vmatpush.bf16.msra.mxu0 %v1833
        %1847 = vmatpush.bf16.msra.mxu0 %v1832
        %1848 = vmatpush.bf16.msra.mxu0 %v1831
        %1849 = vmatpush.bf16.msra.mxu0 %v1830
        %1850 = vmatpush.bf16.msra.mxu0 %v1829
        %1851 = vmatpush.bf16.msra.mxu0 %v1828
        %1852 = vmatmul.bf16.gmra.mxu0 %v1747
        %v1853 = vpop.f32.mrf.mxu0
        %v1854 = vadd.f32 0.0, %v1853
        %v1855 = vpop.f32.mrf.mxu0
        %1856 = vdwg.mxu0
        %v1873 = vunpack.c.l.b16 %v1764
        %v1874 = vunpack.c.l.b16 %v1765
        %v1875 = vunpack.c.l.b16 %v1766
        %v1876 = vunpack.c.l.b16 %v1767
        %v1877 = vunpack.c.l.b16 %v1768
        %v1878 = vunpack.c.l.b16 %v1769
        %v1879 = vunpack.c.l.b16 %v1770
        %v1880 = vunpack.c.l.b16 %v1771
        %v1881 = vunpack.c.l.b16 %v1772
        %v1882 = vunpack.c.l.b16 %v1773
        %v1883 = vunpack.c.l.b16 %v1774
        %v1884 = vunpack.c.l.b16 %v1775
        %v1885 = vunpack.c.l.b16 %v1776
        %v1886 = vunpack.c.l.b16 %v1777
        %v1887 = vunpack.c.l.b16 %v1778
        %v1888 = vunpack.c.l.b16 %v1779
        %v1889 = vpack.c.b16 %v1874, %v1873
        %v1890 = vpack.c.b16 %v1876, %v1875
        %v1891 = vpack.c.b16 %v1878, %v1877
        %v1892 = vpack.c.b16 %v1880, %v1879
        %v1893 = vpack.c.b16 %v1882, %v1881
        %v1894 = vpack.c.b16 %v1884, %v1883
        %v1895 = vpack.c.b16 %v1886, %v1885
        %v1896 = vpack.c.b16 %v1888, %v1887
        %1905 = vmatpush.bf16.msra.mxu0 %v1896
        %1906 = vmatpush.bf16.msra.mxu0 %v1895
        %1907 = vmatpush.bf16.msra.mxu0 %v1894
        %1908 = vmatpush.bf16.msra.mxu0 %v1893
        %1909 = vmatpush.bf16.msra.mxu0 %v1892
        %1910 = vmatpush.bf16.msra.mxu0 %v1891
        %1911 = vmatpush.bf16.msra.mxu0 %v1890
        %1912 = vmatpush.bf16.msra.mxu0 %v1889
        %1913 = vmatmul.bf16.gmra.mxu0 %v1745
        %v1914 = vpop.f32.mrf.mxu0
        %v1915 = vadd.f32 %v1854, %v1914
        %v1916 = vpop.f32.mrf.mxu0
        %1917 = vdwg.mxu0
        %v1934 = vunpack.c.l.b16 %v1748
        %v1935 = vunpack.c.l.b16 %v1749
        %v1936 = vunpack.c.l.b16 %v1750
        %v1937 = vunpack.c.l.b16 %v1751
        %v1938 = vunpack.c.l.b16 %v1752
        %v1939 = vunpack.c.l.b16 %v1753
        %v1940 = vunpack.c.l.b16 %v1754
        %v1941 = vunpack.c.l.b16 %v1755
        %v1942 = vunpack.c.l.b16 %v1756
        %v1943 = vunpack.c.l.b16 %v1757
        %v1944 = vunpack.c.l.b16 %v1758
        %v1945 = vunpack.c.l.b16 %v1759
        %v1946 = vunpack.c.l.b16 %v1760
        %v1947 = vunpack.c.l.b16 %v1761
        %v1948 = vunpack.c.l.b16 %v1762
        %v1949 = vunpack.c.l.b16 %v1763
        %v1950 = vpack.c.b16 %v1935, %v1934
        %v1951 = vpack.c.b16 %v1937, %v1936
        %v1952 = vpack.c.b16 %v1939, %v1938
        %v1953 = vpack.c.b16 %v1941, %v1940
        %v1954 = vpack.c.b16 %v1943, %v1942
        %v1955 = vpack.c.b16 %v1945, %v1944
        %v1956 = vpack.c.b16 %v1947, %v1946
        %v1957 = vpack.c.b16 %v1949, %v1948
        %1966 = vmatpush.bf16.msra.mxu0 %v1957
        %1967 = vmatpush.bf16.msra.mxu0 %v1956
        %1968 = vmatpush.bf16.msra.mxu0 %v1955
        %1969 = vmatpush.bf16.msra.mxu0 %v1954
        %1970 = vmatpush.bf16.msra.mxu0 %v1953
        %1971 = vmatpush.bf16.msra.mxu0 %v1952
        %1972 = vmatpush.bf16.msra.mxu0 %v1951
        %1973 = vmatpush.bf16.msra.mxu0 %v1950
        %1974 = vmatmul.bf16.gmra.mxu0 %v1743
        %v1975 = vpop.f32.mrf.mxu0
        %v1976 = vadd.f32 0.0, %v1975
        %v1977 = vpop.f32.mrf.mxu0
        %1978 = vdwg.mxu0
        %v1979 = vadd.f32 %v1915, %v1976
        %v1980 = vperm.slane %v1739, 0
        %v1981 = vadd.f32 %v1979, %v1980
        %vm1982 = vcmp.ge.f32.partialorder %v1981, 0.0
        %v1983 = vmul.f32 %v1981, 0.2
        %v1984 = vsel %vm1982, %v1981, %v1983
        %v1985 = vperm.slane %v1740, 0
        %v1986 = vmul.f32 %v1984, %v1985
        %v1987 = vperm.slane %v1741, 0
        %v1988 = vadd.f32 %v1986, %v1987
        %1989 = vst [vmem:[%s582] sm:$0xf] %v1988
        %1990 = vst [vmem:[#allocation2 + $0x1] sm:$0xf] %v1988
        %v1991 = vld [vmem:[#allocation12 + $0x95] sm:$0x1]
        %v1992 = vld [vmem:[#allocation12 + $0x96] sm:$0x1]
        %v1993 = vld [vmem:[#allocation12 + $0x97] sm:$0x1]
        %v1994 = vld [vmem:[#allocation2] ss:$2 sm:$0x3]
        %v1995 = vpack.c.bf16 %v1994, %v1994
        %v1996 = vld [vmem:[%s661] ss:$2 sm:$0x3]
        %v1997 = vpack.c.bf16 %v1996, %v1996
        %v1998 = vld [vmem:[%s664] ss:$2 sm:$0x3]
        %v1999 = vpack.c.bf16 %v1998, %v1998
        %v2000 = vld [vmem:[#allocation11 + $0x180] sm:$0xf]
        %v2001 = vld [vmem:[#allocation11 + $0x184] sm:$0xf]
        %v2002 = vld [vmem:[#allocation11 + $0x188] sm:$0xf]
        %v2003 = vld [vmem:[#allocation11 + $0x18c] sm:$0xf]
        %v2004 = vld [vmem:[#allocation11 + $0x190] sm:$0xf]
        %v2005 = vld [vmem:[#allocation11 + $0x194] sm:$0xf]
        %v2006 = vld [vmem:[#allocation11 + $0x198] sm:$0xf]
        %v2007 = vld [vmem:[#allocation11 + $0x19c] sm:$0xf]
        %v2008 = vld [vmem:[#allocation11 + $0x1a0] sm:$0xf]
        %v2009 = vld [vmem:[#allocation11 + $0x1a4] sm:$0xf]
        %v2010 = vld [vmem:[#allocation11 + $0x1a8] sm:$0xf]
        %v2011 = vld [vmem:[#allocation11 + $0x1ac] sm:$0xf]
        %v2012 = vld [vmem:[#allocation11 + $0x1b0] sm:$0xf]
        %v2013 = vld [vmem:[#allocation11 + $0x1b4] sm:$0xf]
        %v2014 = vld [vmem:[#allocation11 + $0x1b8] sm:$0xf]
        %v2015 = vld [vmem:[#allocation11 + $0x1bc] sm:$0xf]
        %v2016 = vld [vmem:[#allocation11 + $0x1c0] sm:$0xf]
        %v2017 = vld [vmem:[#allocation11 + $0x1c4] sm:$0xf]
        %v2018 = vld [vmem:[#allocation11 + $0x1c8] sm:$0xf]
        %v2019 = vld [vmem:[#allocation11 + $0x1cc] sm:$0xf]
        %v2020 = vld [vmem:[#allocation11 + $0x1d0] sm:$0xf]
        %v2021 = vld [vmem:[#allocation11 + $0x1d4] sm:$0xf]
        %v2022 = vld [vmem:[#allocation11 + $0x1d8] sm:$0xf]
        %v2023 = vld [vmem:[#allocation11 + $0x1dc] sm:$0xf]
        %v2024 = vld [vmem:[#allocation11 + $0x1e0] sm:$0xf]
        %v2025 = vld [vmem:[#allocation11 + $0x1e4] sm:$0xf]
        %v2026 = vld [vmem:[#allocation11 + $0x1e8] sm:$0xf]
        %v2027 = vld [vmem:[#allocation11 + $0x1ec] sm:$0xf]
        %v2028 = vld [vmem:[#allocation11 + $0x1f0] sm:$0xf]
        %v2029 = vld [vmem:[#allocation11 + $0x1f4] sm:$0xf]
        %v2030 = vld [vmem:[#allocation11 + $0x1f8] sm:$0xf]
        %v2031 = vld [vmem:[#allocation11 + $0x1fc] sm:$0xf]
        %v2032 = vld [vmem:[#allocation11 + $0x200] sm:$0xf]
        %v2033 = vld [vmem:[#allocation11 + $0x204] sm:$0xf]
        %v2034 = vld [vmem:[#allocation11 + $0x208] sm:$0xf]
        %v2035 = vld [vmem:[#allocation11 + $0x20c] sm:$0xf]
        %v2036 = vld [vmem:[#allocation11 + $0x210] sm:$0xf]
        %v2037 = vld [vmem:[#allocation11 + $0x214] sm:$0xf]
        %v2038 = vld [vmem:[#allocation11 + $0x218] sm:$0xf]
        %v2039 = vld [vmem:[#allocation11 + $0x21c] sm:$0xf]
        %v2040 = vld [vmem:[#allocation11 + $0x220] sm:$0xf]
        %v2041 = vld [vmem:[#allocation11 + $0x224] sm:$0xf]
        %v2042 = vld [vmem:[#allocation11 + $0x228] sm:$0xf]
        %v2043 = vld [vmem:[#allocation11 + $0x22c] sm:$0xf]
        %v2044 = vld [vmem:[#allocation11 + $0x230] sm:$0xf]
        %v2045 = vld [vmem:[#allocation11 + $0x234] sm:$0xf]
        %v2046 = vld [vmem:[#allocation11 + $0x238] sm:$0xf]
        %v2047 = vld [vmem:[#allocation11 + $0x23c] sm:$0xf]
        %v2064 = vunpack.c.l.b16 %v2032
        %v2065 = vunpack.c.l.b16 %v2033
        %v2066 = vunpack.c.l.b16 %v2034
        %v2067 = vunpack.c.l.b16 %v2035
        %v2068 = vunpack.c.l.b16 %v2036
        %v2069 = vunpack.c.l.b16 %v2037
        %v2070 = vunpack.c.l.b16 %v2038
        %v2071 = vunpack.c.l.b16 %v2039
        %v2072 = vunpack.c.l.b16 %v2040
        %v2073 = vunpack.c.l.b16 %v2041
        %v2074 = vunpack.c.l.b16 %v2042
        %v2075 = vunpack.c.l.b16 %v2043
        %v2076 = vunpack.c.l.b16 %v2044
        %v2077 = vunpack.c.l.b16 %v2045
        %v2078 = vunpack.c.l.b16 %v2046
        %v2079 = vunpack.c.l.b16 %v2047
        %v2080 = vpack.c.b16 %v2065, %v2064
        %v2081 = vpack.c.b16 %v2067, %v2066
        %v2082 = vpack.c.b16 %v2069, %v2068
        %v2083 = vpack.c.b16 %v2071, %v2070
        %v2084 = vpack.c.b16 %v2073, %v2072
        %v2085 = vpack.c.b16 %v2075, %v2074
        %v2086 = vpack.c.b16 %v2077, %v2076
        %v2087 = vpack.c.b16 %v2079, %v2078
        %2096 = vmatpush.bf16.msra.mxu0 %v2087
        %2097 = vmatpush.bf16.msra.mxu0 %v2086
        %2098 = vmatpush.bf16.msra.mxu0 %v2085
        %2099 = vmatpush.bf16.msra.mxu0 %v2084
        %2100 = vmatpush.bf16.msra.mxu0 %v2083
        %2101 = vmatpush.bf16.msra.mxu0 %v2082
        %2102 = vmatpush.bf16.msra.mxu0 %v2081
        %2103 = vmatpush.bf16.msra.mxu0 %v2080
        %2104 = vmatmul.bf16.gmra.mxu0 %v1999
        %v2105 = vpop.f32.mrf.mxu0
        %v2106 = vadd.f32 0.0, %v2105
        %v2107 = vpop.f32.mrf.mxu0
        %2108 = vdwg.mxu0
        %v2125 = vunpack.c.l.b16 %v2016
        %v2126 = vunpack.c.l.b16 %v2017
        %v2127 = vunpack.c.l.b16 %v2018
        %v2128 = vunpack.c.l.b16 %v2019
        %v2129 = vunpack.c.l.b16 %v2020
        %v2130 = vunpack.c.l.b16 %v2021
        %v2131 = vunpack.c.l.b16 %v2022
        %v2132 = vunpack.c.l.b16 %v2023
        %v2133 = vunpack.c.l.b16 %v2024
        %v2134 = vunpack.c.l.b16 %v2025
        %v2135 = vunpack.c.l.b16 %v2026
        %v2136 = vunpack.c.l.b16 %v2027
        %v2137 = vunpack.c.l.b16 %v2028
        %v2138 = vunpack.c.l.b16 %v2029
        %v2139 = vunpack.c.l.b16 %v2030
        %v2140 = vunpack.c.l.b16 %v2031
        %v2141 = vpack.c.b16 %v2126, %v2125
        %v2142 = vpack.c.b16 %v2128, %v2127
        %v2143 = vpack.c.b16 %v2130, %v2129
        %v2144 = vpack.c.b16 %v2132, %v2131
        %v2145 = vpack.c.b16 %v2134, %v2133
        %v2146 = vpack.c.b16 %v2136, %v2135
        %v2147 = vpack.c.b16 %v2138, %v2137
        %v2148 = vpack.c.b16 %v2140, %v2139
        %2157 = vmatpush.bf16.msra.mxu0 %v2148
        %2158 = vmatpush.bf16.msra.mxu0 %v2147
        %2159 = vmatpush.bf16.msra.mxu0 %v2146
        %2160 = vmatpush.bf16.msra.mxu0 %v2145
        %2161 = vmatpush.bf16.msra.mxu0 %v2144
        %2162 = vmatpush.bf16.msra.mxu0 %v2143
        %2163 = vmatpush.bf16.msra.mxu0 %v2142
        %2164 = vmatpush.bf16.msra.mxu0 %v2141
        %2165 = vmatmul.bf16.gmra.mxu0 %v1997
        %v2166 = vpop.f32.mrf.mxu0
        %v2167 = vadd.f32 %v2106, %v2166
        %v2168 = vpop.f32.mrf.mxu0
        %2169 = vdwg.mxu0
        %v2186 = vunpack.c.l.b16 %v2000
        %v2187 = vunpack.c.l.b16 %v2001
        %v2188 = vunpack.c.l.b16 %v2002
        %v2189 = vunpack.c.l.b16 %v2003
        %v2190 = vunpack.c.l.b16 %v2004
        %v2191 = vunpack.c.l.b16 %v2005
        %v2192 = vunpack.c.l.b16 %v2006
        %v2193 = vunpack.c.l.b16 %v2007
        %v2194 = vunpack.c.l.b16 %v2008
        %v2195 = vunpack.c.l.b16 %v2009
        %v2196 = vunpack.c.l.b16 %v2010
        %v2197 = vunpack.c.l.b16 %v2011
        %v2198 = vunpack.c.l.b16 %v2012
        %v2199 = vunpack.c.l.b16 %v2013
        %v2200 = vunpack.c.l.b16 %v2014
        %v2201 = vunpack.c.l.b16 %v2015
        %v2202 = vpack.c.b16 %v2187, %v2186
        %v2203 = vpack.c.b16 %v2189, %v2188
        %v2204 = vpack.c.b16 %v2191, %v2190
        %v2205 = vpack.c.b16 %v2193, %v2192
        %v2206 = vpack.c.b16 %v2195, %v2194
        %v2207 = vpack.c.b16 %v2197, %v2196
        %v2208 = vpack.c.b16 %v2199, %v2198
        %v2209 = vpack.c.b16 %v2201, %v2200
        %2218 = vmatpush.bf16.msra.mxu0 %v2209
        %2219 = vmatpush.bf16.msra.mxu0 %v2208
        %2220 = vmatpush.bf16.msra.mxu0 %v2207
        %2221 = vmatpush.bf16.msra.mxu0 %v2206
        %2222 = vmatpush.bf16.msra.mxu0 %v2205
        %2223 = vmatpush.bf16.msra.mxu0 %v2204
        %2224 = vmatpush.bf16.msra.mxu0 %v2203
        %2225 = vmatpush.bf16.msra.mxu0 %v2202
        %2226 = vmatmul.bf16.gmra.mxu0 %v1995
        %v2227 = vpop.f32.mrf.mxu0
        %v2228 = vadd.f32 0.0, %v2227
        %v2229 = vpop.f32.mrf.mxu0
        %2230 = vdwg.mxu0
        %v2231 = vadd.f32 %v2167, %v2228
        %v2232 = vperm.slane %v1991, 0
        %v2233 = vadd.f32 %v2231, %v2232
        %vm2234 = vcmp.ge.f32.partialorder %v2233, 0.0
        %v2235 = vmul.f32 %v2233, 0.2
        %v2236 = vsel %vm2234, %v2233, %v2235
        %v2237 = vperm.slane %v1992, 0
        %v2238 = vmul.f32 %v2236, %v2237
        %v2239 = vperm.slane %v1993, 0
        %v2240 = vadd.f32 %v2238, %v2239
        %2241 = vst [vmem:[%s589] sm:$0x3] %v2240
        %v2242 = vld [vmem:[#allocation12 + $0x98] sm:$0x3]
        %v2243 = vmul.f32 %v2240, %v2242
        %vm2244 = vcmask 1041408
        %v2245 = vsel %vm2244, %v2243, 0.0
        %v2246 = vrot.slane %v2245, 4
        %v2247 = vadd.f32 %v2245, %v2246
        %v2248 = vrot.slane %v2247, 2
        %v2249 = vadd.f32 %v2247, %v2248
        %v2250 = vrot.slane %v2249, 1
        %v2251 = vadd.f32 %v2249, %v2250
        %v2252 = vld [vmem:[#allocation12 + $0x9a] sm:$0x1]
        %v2253 = vadd.f32 %v2251, %v2252
        %v2254 = vsel %vm1411, %v2253, 0.0
        %2255 = vadd.xlane.f32.xlu0 %v2254
        %v2256 = vpop.xlane.xlu0 %2255
        %vm2257 = vcmask 7168
        %v2258 = vsel %vm2257, %v1414, %v2256
        %vm2259 = vcmask 8192
        %2260 = vst.msk [vmem:[%s548] sm:$0x1] %vm2259, %v2258
        %s2261 = sand.u32 %s188, 1
        %s2262 = scalar_lea.sflag [#allocation5], %s2261
        %s2263 = sand.u32 %s188, 1
        %s2264 = scalar_lea.vmem [#allocation14], %s2263
        %s2265 = sand.u32 %s44, 1
        %s2266 = scalar_lea.sflag [#allocation16], %s2265
        %s2267 = sand.u32 %s214, 1
        %s2268 = smul.addr %s2267, 4
        %s2269 = scalar_lea.vmem [#allocation15], %s2268
        %s2270 = sand.u32 %s44, 1
        %s2271 = scalar_lea.sflag [#allocation16], %s2270
        %s2272 = sand.u32 %s240, 1
        %s2273 = smul.addr %s2272, 2
        %s2274 = scalar_lea.vmem [#allocation17], %s2273
        %s2275 = sand.u32 %s44, 1
        %s2276 = scalar_lea.sflag [#allocation19], %s2275
        %s2277 = sand.u32 %s266, 1
        %s2278 = scalar_lea.vmem [#allocation18], %s2277
        %s2279 = sand.u32 %s44, 1
        %s2280 = scalar_lea.sflag [#allocation19], %s2279
        %s2281 = sand.u32 %s292, 1
        %s2282 = smul.addr %s2281, 8
        %s2283 = scalar_lea.vmem [#allocation20], %s2282
        %s2284 = sand.u32 %s44, 1
        %s2285 = scalar_lea.sflag [#allocation22], %s2284
        %s2286 = sand.u32 %s318, 1
        %s2287 = smul.addr %s2286, 4
        %s2288 = scalar_lea.vmem [#allocation21], %s2287
        %s2289 = sand.u32 %s44, 1
        %s2290 = scalar_lea.sflag [#allocation22], %s2289
        %s2291 = sand.u32 %s344, 1
        %s2292 = smul.addr %s2291, 2
        %s2293 = scalar_lea.vmem [#allocation23], %s2292
        // Predicated region
        $region69: #{tpu_custom_call.1} parent=43 // pred_check
          %p2294 = pneg %p198
        $region70: #{tpu_custom_call.1} parent=43 // pred_check_branch
          %2296 = sbr.rel (%p2294) target = $region72
        $region71: #{tpu_custom_call.1} parent=43 // pred_region
          %2298 = vsyncadd %s2262, 0
          %s2299 = scalar_lea.hbm %s6, %s44
          %s2301 = sshll.u32 %s2264, 4
          %s2302 = int_to_ptr.vmem [resolvable:$true] %s2301
          %s2303 = sshll.u32 %s2299, 4
          %s2304 = int_to_ptr.hbm [resolvable:$true] %s2303
          %2306 = dma.vmem_to_hbm [thread:$0]  %s2302, 16, %s2304, %s2262
        $region72: #{tpu_custom_call.1} parent=43 // pred_fallthru
          _
        // Predicated region
        $region73: #{tpu_custom_call.1} parent=43 // pred_check
          %p2307 = pneg %p224
        $region74: #{tpu_custom_call.1} parent=43 // pred_check_branch
          %2309 = sbr.rel (%p2307) target = $region76
        $region75: #{tpu_custom_call.1} parent=43 // pred_region
          %2311 = vsyncadd %s2266, 0
          %s2312 = smul.addr %s44, 4
          %s2313 = scalar_lea.hbm %s7, %s2312
          %s2315 = sshll.u32 %s2269, 4
          %s2316 = int_to_ptr.vmem [resolvable:$true] %s2315
          %s2317 = sshll.u32 %s2313, 4
          %s2318 = int_to_ptr.hbm [resolvable:$true] %s2317
          %2320 = dma.vmem_to_hbm [thread:$0]  %s2316, 64, %s2318, %s2266
        $region76: #{tpu_custom_call.1} parent=43 // pred_fallthru
          _
        // Predicated region
        $region77: #{tpu_custom_call.1} parent=43 // pred_check
          %p2321 = pneg %p250
        $region78: #{tpu_custom_call.1} parent=43 // pred_check_branch
          %2323 = sbr.rel (%p2321) target = $region80
        $region79: #{tpu_custom_call.1} parent=43 // pred_region
          %2325 = vsyncadd %s2271, 0
          %s2326 = smul.addr %s44, 2
          %s2327 = scalar_lea.hbm %s8, %s2326
          %s2329 = sshll.u32 %s2274, 4
          %s2330 = int_to_ptr.vmem [resolvable:$true] %s2329
          %s2331 = sshll.u32 %s2327, 4
          %s2332 = int_to_ptr.hbm [resolvable:$true] %s2331
          %2334 = dma.vmem_to_hbm [thread:$0]  %s2330, 32, %s2332, %s2271
        $region80: #{tpu_custom_call.1} parent=43 // pred_fallthru
          _
        // Predicated region
        $region81: #{tpu_custom_call.1} parent=43 // pred_check
          %p2335 = pneg %p276
        $region82: #{tpu_custom_call.1} parent=43 // pred_check_branch
          %2337 = sbr.rel (%p2335) target = $region84
        $region83: #{tpu_custom_call.1} parent=43 // pred_region
          %2339 = vsyncadd %s2276, 0
          %s2340 = scalar_lea.hbm %s9, %s44
          %s2342 = sshll.u32 %s2278, 4
          %s2343 = int_to_ptr.vmem [resolvable:$true] %s2342
          %s2344 = sshll.u32 %s2340, 4
          %s2345 = int_to_ptr.hbm [resolvable:$true] %s2344
          %2347 = dma.vmem_to_hbm [thread:$0]  %s2343, 16, %s2345, %s2276
        $region84: #{tpu_custom_call.1} parent=43 // pred_fallthru
          _
        // Predicated region
        $region85: #{tpu_custom_call.1} parent=43 // pred_check
          %p2348 = pneg %p302
        $region86: #{tpu_custom_call.1} parent=43 // pred_check_branch
          %2350 = sbr.rel (%p2348) target = $region88
        $region87: #{tpu_custom_call.1} parent=43 // pred_region
          %2352 = vsyncadd %s2280, 0
          %s2353 = smul.addr %s44, 8
          %s2354 = scalar_lea.hbm %s10, %s2353
          %s2356 = sshll.u32 %s2283, 4
          %s2357 = int_to_ptr.vmem [resolvable:$true] %s2356
          %s2358 = sshll.u32 %s2354, 4
          %s2359 = int_to_ptr.hbm [resolvable:$true] %s2358
          %2361 = dma.vmem_to_hbm [thread:$0]  %s2357, 128, %s2359, %s2280
        $region88: #{tpu_custom_call.1} parent=43 // pred_fallthru
          _
        // Predicated region
        $region89: #{tpu_custom_call.1} parent=43 // pred_check
          %p2362 = pneg %p328
        $region90: #{tpu_custom_call.1} parent=43 // pred_check_branch
          %2364 = sbr.rel (%p2362) target = $region92
        $region91: #{tpu_custom_call.1} parent=43 // pred_region
          %2366 = vsyncadd %s2285, 0
          %s2367 = smul.addr %s44, 4
          %s2368 = scalar_lea.hbm %s11, %s2367
          %s2370 = sshll.u32 %s2288, 4
          %s2371 = int_to_ptr.vmem [resolvable:$true] %s2370
          %s2372 = sshll.u32 %s2368, 4
          %s2373 = int_to_ptr.hbm [resolvable:$true] %s2372
          %2375 = dma.vmem_to_hbm [thread:$0]  %s2371, 64, %s2373, %s2285
        $region92: #{tpu_custom_call.1} parent=43 // pred_fallthru
          _
        // Predicated region
        $region93: #{tpu_custom_call.1} parent=43 // pred_check
          %p2376 = pneg %p354
        $region94: #{tpu_custom_call.1} parent=43 // pred_check_branch
          %2378 = sbr.rel (%p2376) target = $region96
        $region95: #{tpu_custom_call.1} parent=43 // pred_region
          %2380 = vsyncadd %s2290, 0
          %s2381 = smul.addr %s44, 2
          %s2382 = scalar_lea.hbm %s12, %s2381
          %s2384 = sshll.u32 %s2293, 4
          %s2385 = int_to_ptr.vmem [resolvable:$true] %s2384
          %s2386 = sshll.u32 %s2382, 4
          %s2387 = int_to_ptr.hbm [resolvable:$true] %s2386
          %2389 = dma.vmem_to_hbm [thread:$0]  %s2385, 32, %s2387, %s2290
        $region96: #{tpu_custom_call.1} parent=43 // pred_fallthru
          _
      $region44: #{tpu_custom_call.1} parent=5 // pred_fallthru
        _
      %p2390 = scmp.le.s32.totalorder 2, %s39
      // Predicated region
      $region97: #{tpu_custom_call.1} parent=5 // pred_check
        %p2391 = pneg %p2390
      $region98: #{tpu_custom_call.1} parent=5 // pred_check_branch
        %2393 = sbr.rel (%p2391) target = $region100
      $region99: #{tpu_custom_call.1} parent=5 // pred_region
        %s2394 = ssub.s32 %s39, 2
        // Predicated region
        $region101: #{tpu_custom_call.1} parent=99 // pred_check
          %p2395 = pneg %p204
        $region102: #{tpu_custom_call.1} parent=99 // pred_check_branch
          %2397 = sbr.rel (%p2395) target = $region104
        $region103: #{tpu_custom_call.1} parent=99 // pred_region
          %s2398 = sand.u32 %s189, 1
          %s2399 = scalar_lea.sflag [#allocation5], %s2398
          %s2400 = sand.u32 %s189, 1
          %s2401 = scalar_lea.vmem [#allocation14], %s2400
          %2403 = dma.done %s2399, 16
        $region104: #{tpu_custom_call.1} parent=99 // pred_fallthru
          _
        // Predicated region
        $region105: #{tpu_custom_call.1} parent=99 // pred_check
          %p2404 = pneg %p230
        $region106: #{tpu_custom_call.1} parent=99 // pred_check_branch
          %2406 = sbr.rel (%p2404) target = $region108
        $region107: #{tpu_custom_call.1} parent=99 // pred_region
          %s2407 = sand.u32 %s45, 1
          %s2408 = scalar_lea.sflag [#allocation16], %s2407
          %s2409 = sand.u32 %s215, 1
          %s2410 = smul.addr %s2409, 4
          %s2411 = scalar_lea.vmem [#allocation15], %s2410
          %2413 = dma.done %s2408, 64
        $region108: #{tpu_custom_call.1} parent=99 // pred_fallthru
          _
        // Predicated region
        $region109: #{tpu_custom_call.1} parent=99 // pred_check
          %p2414 = pneg %p256
        $region110: #{tpu_custom_call.1} parent=99 // pred_check_branch
          %2416 = sbr.rel (%p2414) target = $region112
        $region111: #{tpu_custom_call.1} parent=99 // pred_region
          %s2417 = sand.u32 %s45, 1
          %s2418 = scalar_lea.sflag [#allocation16], %s2417
          %s2419 = sand.u32 %s241, 1
          %s2420 = smul.addr %s2419, 2
          %s2421 = scalar_lea.vmem [#allocation17], %s2420
          %2423 = dma.done %s2418, 32
        $region112: #{tpu_custom_call.1} parent=99 // pred_fallthru
          _
        // Predicated region
        $region113: #{tpu_custom_call.1} parent=99 // pred_check
          %p2424 = pneg %p282
        $region114: #{tpu_custom_call.1} parent=99 // pred_check_branch
          %2426 = sbr.rel (%p2424) target = $region116
        $region115: #{tpu_custom_call.1} parent=99 // pred_region
          %s2427 = sand.u32 %s45, 1
          %s2428 = scalar_lea.sflag [#allocation19], %s2427
          %s2429 = sand.u32 %s267, 1
          %s2430 = scalar_lea.vmem [#allocation18], %s2429
          %2432 = dma.done %s2428, 16
        $region116: #{tpu_custom_call.1} parent=99 // pred_fallthru
          _
        // Predicated region
        $region117: #{tpu_custom_call.1} parent=99 // pred_check
          %p2433 = pneg %p308
        $region118: #{tpu_custom_call.1} parent=99 // pred_check_branch
          %2435 = sbr.rel (%p2433) target = $region120
        $region119: #{tpu_custom_call.1} parent=99 // pred_region
          %s2436 = sand.u32 %s45, 1
          %s2437 = scalar_lea.sflag [#allocation19], %s2436
          %s2438 = sand.u32 %s293, 1
          %s2439 = smul.addr %s2438, 8
          %s2440 = scalar_lea.vmem [#allocation20], %s2439
          %2442 = dma.done %s2437, 128
        $region120: #{tpu_custom_call.1} parent=99 // pred_fallthru
          _
        // Predicated region
        $region121: #{tpu_custom_call.1} parent=99 // pred_check
          %p2443 = pneg %p334
        $region122: #{tpu_custom_call.1} parent=99 // pred_check_branch
          %2445 = sbr.rel (%p2443) target = $region124
        $region123: #{tpu_custom_call.1} parent=99 // pred_region
          %s2446 = sand.u32 %s45, 1
          %s2447 = scalar_lea.sflag [#allocation22], %s2446
          %s2448 = sand.u32 %s319, 1
          %s2449 = smul.addr %s2448, 4
          %s2450 = scalar_lea.vmem [#allocation21], %s2449
          %2452 = dma.done %s2447, 64
        $region124: #{tpu_custom_call.1} parent=99 // pred_fallthru
          _
        // Predicated region
        $region125: #{tpu_custom_call.1} parent=99 // pred_check
          %p2453 = pneg %p360
        $region126: #{tpu_custom_call.1} parent=99 // pred_check_branch
          %2455 = sbr.rel (%p2453) target = $region128
        $region127: #{tpu_custom_call.1} parent=99 // pred_region
          %s2456 = sand.u32 %s45, 1
          %s2457 = scalar_lea.sflag [#allocation22], %s2456
          %s2458 = sand.u32 %s345, 1
          %s2459 = smul.addr %s2458, 2
          %s2460 = scalar_lea.vmem [#allocation23], %s2459
          %2462 = dma.done %s2457, 32
        $region128: #{tpu_custom_call.1} parent=99 // pred_fallthru
          _
      $region100: #{tpu_custom_call.1} parent=5 // pred_fallthru
        _
    $region6: #{tpu_custom_call.1} parent=1 // loop_footer
      %s43 = sadd.s32 1, %s39
    $region7: #{tpu_custom_call.1} parent=1 // loop_footer_branch
      %38 = sbr.rel target = $region3
    $region8: #{tpu_custom_call.1} parent=1 // loop_exit
      _
    %2463 = vsyncpa [#allocation4], 1
    %s2464 = scalar_lea.sflag [#allocation4], 1
    %2465 = vsyncpa %s2464, 1
    %2466 = vsyncpa [#allocation7], 1
    %2467 = vsyncpa [#allocation10], 1
    %s2468 = scalar_lea.sflag [#allocation10], 1
    %2469 = vsyncpa %s2468, 1
    %2470 = vsyncpa [#allocation13], 1
    %2471 = vsyncpa [#allocation5], 1
    %s2472 = scalar_lea.sflag [#allocation5], 1
    %2473 = vsyncpa %s2472, 1
    %2474 = vsyncpa [#allocation16], 1
    %s2475 = scalar_lea.sflag [#allocation16], 1
    %2476 = vsyncpa %s2475, 1
    %2477 = vsyncpa [#allocation19], 1
    %s2478 = scalar_lea.sflag [#allocation19], 1
    %2479 = vsyncpa %s2478, 1
    %2480 = vsyncpa [#allocation22], 1
    %s2481 = scalar_lea.sflag [#allocation22], 1
    %2482 = vsyncpa %s2481, 1

</llo_original>
